<compile_context>
chip_gen: v6e
topology: v6e:2x2x1
jax: 0.10.0
libtpu: 0.0.40
codegen_flags: <defaults>
</compile_context>

<pallas_src>
import functools

import jax
import jax.numpy as jnp
import numpy as np
from jax.experimental import pallas as pl
from jax.experimental.pallas import tpu as pltpu


# ----------------------------------------------------------------------------
# In-kernel helpers
# ----------------------------------------------------------------------------
def _col_to_row(v, eye):
    """Lowering-safe (C, 1) -> (1, C) using a hoisted diagonal mask.

    Built only from where + sublane reduce, so it never relies on small-shape
    transpose/reshape relayouts inside Mosaic.  `eye` is a (C, C) bool mask
    built once in the kernel preamble.
    """
    return jnp.sum(jnp.where(eye, v, 0.0), axis=0, keepdims=True)


def _dtc_block(x, dw_cols, g1, w1, g2, b2, w2, g3, b3, *,
               masks, eye, kernel_size, dilation, residual, eps, seq_len):
    """One DTCBlock on a lane-dense (C, N*T) f32 activation."""
    k = kernel_size

    # ---- depthwise causal dilated conv (groups = Cin) ----------------------
    # out[c, t] = sum_j w[c, j] * x[c, t - (k-1-j)*dilation]   (zero left-pad)
    # The conv bias is a per-channel constant removed exactly by bn1's
    # batch-statistic centering -> omitted.
    acc = x * dw_cols[k - 1]                          # j = k-1 tap (shift 0)
    for j in range(k - 1):
        shift = (k - 1 - j) * dilation                # static python int
        if shift >= seq_len:                          # tap reads only padding
            continue
        rolled = pltpu.roll(x, shift, 1)              # lane roll on the XLU
        acc = acc + jnp.where(masks[shift], rolled, 0.0) * dw_cols[j]
    y = acc                                           # (Cin, N*T)

    # ---- bn1 (batch stats), scale folded into point_conv1 ------------------
    # cen1 is only needed for the variance (bn1's centering is a per-channel
    # constant absorbed by bn2), so use E[y^2]-E[y]^2 and skip the full
    # (Cin, N*T) subtraction pass.  max(.,0) guards f32 cancellation.
    mean1 = jnp.mean(y, axis=1, keepdims=True)                      # (Cin, 1)
    var1 = jnp.maximum(
        jnp.mean(y * y, axis=1, keepdims=True) - mean1 * mean1, 0.0)
    a1 = g1 * jax.lax.rsqrt(var1 + eps)                             # (Cin, 1)
    # bn1's beta and point_conv1's bias are per-output-channel constants that
    # bn2's centering removes exactly, so only the scale a1 survives; it is
    # folded into point_conv1's columns (no elementwise pass over (Cin, N*T)).
    w1_eff = w1 * _col_to_row(a1, eye)                              # (Cout, Cin)
    p1 = jnp.dot(w1_eff, y, preferred_element_type=jnp.float32)     # (Cout, N*T)

    # ---- bn2 + relu1 --------------------------------------------------------
    mean2 = jnp.mean(p1, axis=1, keepdims=True)
    cen2 = p1 - mean2
    var2 = jnp.mean(cen2 * cen2, axis=1, keepdims=True)
    a2 = g2 * jax.lax.rsqrt(var2 + eps)
    r = jnp.maximum(a2 * cen2 + b2, 0.0)

    # ---- point_conv2 (bias removed exactly by bn3's centering) --------------
    p2 = jnp.dot(w2, r, preferred_element_type=jnp.float32)         # (Cout, N*T)

    # ---- bn3 + residual + relu2 ---------------------------------------------
    mean3 = jnp.mean(p2, axis=1, keepdims=True)
    cen3 = p2 - mean3
    var3 = jnp.mean(cen3 * cen3, axis=1, keepdims=True)
    a3 = g3 * jax.lax.rsqrt(var3 + eps)
    out = a3 * cen3 + b3
    if residual:                                      # in_channels == out_channels
        out = out + x
    return jnp.maximum(out, 0.0)


def _dtc_stack_kernel(x_ref, tbl_ref, slab_ref, o_ref, *,
                      block_meta, kernel_size, eps, seq_len, c_max):
    """block_meta: tuple of (cin, cout, dilation, residual) per block."""
    k = kernel_size
    ncol = k + 5                                      # dw taps, g1, g2, b2, g3, b3

    act = x_ref[...].astype(jnp.float32)              # (C0, N*T)
    nt = act.shape[1]
    tbl = tbl_ref[...].astype(jnp.float32)            # (c_max, stack*ncol)
    slab = slab_ref[...].astype(jnp.float32)          # (2*stack*c_max, c_max)

    # ---- hoisted constants (built once, reused by every block) -------------
    tmod = jax.lax.broadcasted_iota(jnp.int32, (1, nt), 1) % seq_len
    masks = {}
    for (_, _, dilation, _) in block_meta:
        for j in range(k - 1):
            s = (k - 1 - j) * dilation
            if s < seq_len and s not in masks:
                masks[s] = tmod >= s                   # (1, N*T) bool
    eyes = {}
    for (cin, _, _, _) in block_meta:
        if cin not in eyes:
            ii = jax.lax.broadcasted_iota(jnp.int32, (cin, cin), 0)
            jj = jax.lax.broadcasted_iota(jnp.int32, (cin, cin), 1)
            eyes[cin] = ii == jj

    # ---- per-block unpack (static slices) + compute -------------------------
    for b, (cin, cout, dilation, residual) in enumerate(block_meta):
        base = b * ncol
        dw_cols = [tbl[:cin, base + j:base + j + 1] for j in range(k)]
        g1 = tbl[:cin, base + k + 0:base + k + 1]
        g2 = tbl[:cout, base + k + 1:base + k + 2]
        b2 = tbl[:cout, base + k + 2:base + k + 3]
        g3 = tbl[:cout, base + k + 3:base + k + 4]
        b3 = tbl[:cout, base + k + 4:base + k + 5]
        r0 = 2 * b * c_max
        w1 = slab[r0:r0 + cout, :cin]                  # (Cout, Cin)
        w2 = slab[r0 + c_max:r0 + c_max + cout, :cout] # (Cout, Cout)

        act = _dtc_block(act, dw_cols, g1, w1, g2, b2, w2, g3, b3,
                         masks=masks, eye=eyes[cin],
                         kernel_size=k, dilation=dilation,
                         residual=residual, eps=eps, seq_len=seq_len)

    o_ref[...] = act.astype(o_ref.dtype)


# ----------------------------------------------------------------------------
# Wrapper: one pallas_call for the whole stack
# ----------------------------------------------------------------------------
def _round_up(x, m):
    return (x + m - 1) // m * m


def dtc_stack_pallas(x, tbl, slab, block_meta, *, kernel_size, eps=1e-5):
    """x: (N, C_in, T) -> (N, C_out, T).  tbl/slab are the packed params."""
    n, c_in, t = x.shape
    c_out = block_meta[-1][1]
    c_max = tbl.shape[0]
    nt = n * t
    k = kernel_size

    # Lane-dense layout: (N, C, T) -> (C, N*T).  Per-batch causal structure is
    # recovered inside the kernel via the (flat index mod T) masks.
    # TODO(synk): at production sizes fuse this layout change into the
    #             producer/consumer or read per-batch slabs via an index_map
    #             (each transpose is a full extra HBM read+write).
    xf = jnp.transpose(x, (1, 0, 2)).reshape(c_in, nt)

    kernel = functools.partial(_dtc_stack_kernel, block_meta=block_meta,
                               kernel_size=k, eps=eps, seq_len=t, c_max=c_max)

    # ---- cost estimate (advisory) -------------------------------------------
    flops = 0
    for (cin, cout, _, _) in block_meta:
        flops += nt * (2 * k * cin            # depthwise taps
                       + 4 * cin              # bn1 stats
                       + 2 * cout * cin       # point_conv1
                       + 8 * cout             # bn2 + relu
                       + 2 * cout * cout      # point_conv2
                       + 9 * cout)            # bn3 + residual + relu
    transcendentals = sum(cin + 2 * cout for (cin, cout, _, _) in block_meta)
    bytes_accessed = 4 * (c_in * nt + c_out * nt + tbl.size + slab.size)

    # ---- VMEM budget for the gridless call -----------------------------------
    lane_nt = _round_up(nt, 128)
    act_slab_bytes = _round_up(c_max, 8) * lane_nt * 4
    io_bytes = (_round_up(c_in, 8) + _round_up(c_out, 8)) * lane_nt * 4
    param_bytes = (_round_up(tbl.shape[0], 8) * _round_up(tbl.shape[1], 128)
                   + _round_up(slab.shape[0], 8) * _round_up(slab.shape[1], 128)) * 4
    est = 12 * act_slab_bytes + 2 * io_bytes + param_bytes
    vmem_limit = int(min(64 * 2 ** 20, max(16 * 2 ** 20, 2 * est)))

    out_flat = pl.pallas_call(
        kernel,
        out_shape=jax.ShapeDtypeStruct((c_out, nt), x.dtype),
        in_specs=[pl.BlockSpec(memory_space=pltpu.MemorySpace.VMEM)] * 3,
        out_specs=pl.BlockSpec(memory_space=pltpu.MemorySpace.VMEM),
        compiler_params=pltpu.CompilerParams(vmem_limit_bytes=vmem_limit),
        cost_estimate=pl.CostEstimate(flops=int(flops),
                                      transcendentals=int(transcendentals),
                                      bytes_accessed=int(bytes_accessed)),
    )(xf, tbl, slab)

    return jnp.transpose(out_flat.reshape(c_out, n, t), (1, 0, 2))


# ----------------------------------------------------------------------------
# Parameter init (deterministic, shapes from the PyTorch module __init__)
# ----------------------------------------------------------------------------
def init_block_params(key, cin, cout, k):
    ks = jax.random.split(key, 12)
    f32 = jnp.float32
    return {
        # CausalConv1d depthwise: weight (cin, 1, k) -> stored as (cin, k)
        "dw_w": jax.random.normal(ks[0], (cin, k), f32) / np.sqrt(k),
        "dw_b": 0.1 * jax.random.normal(ks[1], (cin, 1), f32),
        # bn1
        "g1": 1.0 + 0.1 * jax.random.normal(ks[2], (cin, 1), f32),
        "b1": 0.1 * jax.random.normal(ks[3], (cin, 1), f32),
        # point_conv1: weight (cout, cin, 1) -> (cout, cin)
        "w1": jax.random.normal(ks[4], (cout, cin), f32) / np.sqrt(cin),
        "pb1": 0.1 * jax.random.normal(ks[5], (cout, 1), f32),
        # bn2
        "g2": 1.0 + 0.1 * jax.random.normal(ks[6], (cout, 1), f32),
        "b2": 0.1 * jax.random.normal(ks[7], (cout, 1), f32),
        # point_conv2: weight (cout, cout, 1) -> (cout, cout)
        "w2": jax.random.normal(ks[8], (cout, cout), f32) / np.sqrt(cout),
        "pb2": 0.1 * jax.random.normal(ks[9], (cout, 1), f32),
        # bn3
        "g3": 1.0 + 0.1 * jax.random.normal(ks[10], (cout, 1), f32),
        "b3": 0.1 * jax.random.normal(ks[11], (cout, 1), f32),
    }


def _pack_block_params(blocks, kernel_size, c_max):
    """Consolidate all per-block params into two dense arrays (see header)."""
    k = kernel_size
    stack = len(blocks)
    ncol = k + 5
    tbl = np.zeros((c_max, stack * ncol), np.float32)
    slab = np.zeros((2 * stack * c_max, c_max), np.float32)
    for b, blk in enumerate(blocks):
        p = blk["params"]
        cout, cin = p["w1"].shape
        base = b * ncol
        tbl[:cin, base:base + k] = np.asarray(p["dw_w"])
        tbl[:cin, base + k + 0] = np.asarray(p["g1"])[:, 0]
        tbl[:cout, base + k + 1] = np.asarray(p["g2"])[:, 0]
        tbl[:cout, base + k + 2] = np.asarray(p["b2"])[:, 0]
        tbl[:cout, base + k + 3] = np.asarray(p["g3"])[:, 0]
        tbl[:cout, base + k + 4] = np.asarray(p["b3"])[:, 0]
        r0 = 2 * b * c_max
        slab[r0:r0 + cout, :cin] = np.asarray(p["w1"])
        slab[r0 + c_max:r0 + c_max + cout, :cout] = np.asarray(p["w2"])
    return jnp.asarray(tbl), jnp.asarray(slab)


class DTCStackPallas:
    """Pallas equivalent of DTCStack: stack_size DTCBlocks, dilation 2**i."""

    def __init__(self, key, in_channels, out_channels, kernel_size, stack_size):
        self.kernel_size = kernel_size
        keys = jax.random.split(key, stack_size)
        self.blocks = []
        cin = in_channels
        for i in range(stack_size):
            params = init_block_params(keys[i], cin, out_channels, kernel_size)
            self.blocks.append(dict(params=params,
                                    dilation=2 ** i,
                                    residual=(cin == out_channels)))
            cin = out_channels
        self.c_max = max(in_channels, out_channels)
        self.block_meta = tuple(
            (blk["params"]["w1"].shape[1], blk["params"]["w1"].shape[0],
             blk["dilation"], blk["residual"]) for blk in self.blocks)
        self.tbl, self.slab = _pack_block_params(self.blocks, kernel_size,
                                                 self.c_max)

    def __call__(self, x):
        return dtc_stack_pallas(x, self.tbl, self.slab, self.block_meta,
                                kernel_size=self.kernel_size)


# ----------------------------------------------------------------------------
# Pure-JAX reference (mirrors PyTorch semantics, uses ALL parameters) — the
# assert below also validates the bias-cancellation and var-shortcut
# simplifications in the kernel.
# ----------------------------------------------------------------------------
def _ref_block(x, p, kernel_size, dilation, residual, eps=1e-5):
    N, Cin, T = x.shape
    pad = (kernel_size - 1) * dilation
    w = p["dw_w"][:, None, :]                      # (Cin, 1, K)  == OIH, groups=Cin
    y = jax.lax.conv_general_dilated(
        x, w, window_strides=(1,), padding=[(pad, pad)],
        rhs_dilation=(dilation,), feature_group_count=Cin,
        dimension_numbers=("NCH", "OIH", "NCH"))
    y = y[:, :, :T] + p["dw_b"][None]              # causal slice [:-pad]

    def bn(z, g, b):
        mean = jnp.mean(z, axis=(0, 2), keepdims=True)
        var = jnp.mean((z - mean) ** 2, axis=(0, 2), keepdims=True)
        return g[None] * (z - mean) * jax.lax.rsqrt(var + eps) + b[None]

    def pconv(z, w_, b_):
        return jnp.einsum("oc,nct->not", w_, z) + b_[None]

    y = bn(y, p["g1"], p["b1"])
    y = pconv(y, p["w1"], p["pb1"])
    y = jnp.maximum(bn(y, p["g2"], p["b2"]), 0.0)
    y = pconv(y, p["w2"], p["pb2"])
    y = bn(y, p["g3"], p["b3"])
    if residual:
        y = y + x
    return jnp.maximum(y, 0.0)


def ref_stack(model, x):
    for blk in model.blocks:
        x = _ref_block(x, blk["params"], model.kernel_size,
                       blk["dilation"], blk["residual"])
    return x


# ----------------------------------------------------------------------------
if __name__ == "__main__":
    key = jax.random.PRNGKey(0)
    k_x, k_p = jax.random.split(key)

    N, C_IN, C_OUT, T = 2, 8, 16, 64          # N*T = 128 -> lane-dense layout
    KERNEL_SIZE, STACK_SIZE = 3, 3

    x = jax.random.normal(k_x, (N, C_IN, T), jnp.float32)

    model = DTCStackPallas(k_p, C_IN, C_OUT, KERNEL_SIZE, STACK_SIZE)

    out = jax.block_until_ready(model(x))

    ref = jax.block_until_ready(ref_stack(model, x))
    np.testing.assert_allclose(np.asarray(out), np.asarray(ref),
                               rtol=1e-3, atol=1e-3)

    print("KERNEL_OK")
</pallas_src>

<mosaic_0001>
module attributes {stable_mosaic.version = 11 : i64} {
  func.func @_dtc_stack_kernel(%arg0: memref<8x128xf32, #tpu.memory_space<vmem>>, %arg1: memref<16x24xf32, #tpu.memory_space<vmem>>, %arg2: memref<96x16xf32, #tpu.memory_space<vmem>>, %arg3: memref<16x128xf32, #tpu.memory_space<vmem>>) attributes {dimension_semantics = [], scalar_prefetch = 0 : i64, scratch_operands = 0 : i64, tpu.core_type = #tpu.core_type<tc>} {
    %c0 = arith.constant 0 : index
    %c0_0 = arith.constant 0 : index
    %0 = vector.load %arg0[%c0, %c0_0] : memref<8x128xf32, #tpu.memory_space<vmem>>, vector<8x128xf32>
    %c0_1 = arith.constant 0 : index
    %c0_2 = arith.constant 0 : index
    %1 = vector.load %arg1[%c0_1, %c0_2] : memref<16x24xf32, #tpu.memory_space<vmem>>, vector<16x24xf32>
    %c0_3 = arith.constant 0 : index
    %c0_4 = arith.constant 0 : index
    %2 = vector.load %arg2[%c0_3, %c0_4] : memref<96x16xf32, #tpu.memory_space<vmem>>, vector<96x16xf32>
    %3 = tpu.iota {dimensions = array<i32: 1>} : vector<1x128xi32>
    %c64_i32 = arith.constant 64 : i32
    %c0_i32 = arith.constant 0 : i32
    %4 = arith.cmpi eq, %c64_i32, %c0_i32 : i32
    %c1_i32 = arith.constant 1 : i32
    %5 = arith.select %4, %c1_i32, %c64_i32 : i32
    %6 = vector.broadcast %5 : i32 to vector<1x128xi32>
    %7 = arith.remsi %3, %6 : vector<1x128xi32>
    %c0_i32_5 = arith.constant 0 : i32
    %8 = vector.broadcast %c0_i32_5 : i32 to vector<1x128xi32>
    %9 = arith.cmpi ne, %7, %8 : vector<1x128xi32>
    %c0_i32_6 = arith.constant 0 : i32
    %10 = vector.broadcast %c0_i32_6 : i32 to vector<1x128xi32>
    %11 = arith.cmpi slt, %7, %10 : vector<1x128xi32>
    %c0_i32_7 = arith.constant 0 : i32
    %12 = arith.cmpi slt, %5, %c0_i32_7 : i32
    %13 = vector.broadcast %12 : i1 to vector<1x128xi1>
    %14 = vector.broadcast %13 : vector<1x128xi1> to vector<1x128xi1>
    %15 = arith.xori %11, %14 : vector<1x128xi1>
    %16 = arith.andi %15, %9 : vector<1x128xi1>
    %17 = vector.broadcast %5 : i32 to vector<1x128xi32>
    %18 = arith.addi %7, %17 : vector<1x128xi32>
    %19 = arith.select %16, %18, %7 : vector<1x128xi1>, vector<1x128xi32>
    %c2_i32 = arith.constant 2 : i32
    %20 = vector.broadcast %c2_i32 : i32 to vector<1x128xi32>
    %21 = arith.cmpi sge, %19, %20 : vector<1x128xi32>
    %c1_i32_8 = arith.constant 1 : i32
    %22 = vector.broadcast %c1_i32_8 : i32 to vector<1x128xi32>
    %23 = arith.cmpi sge, %19, %22 : vector<1x128xi32>
    %c4_i32 = arith.constant 4 : i32
    %24 = vector.broadcast %c4_i32 : i32 to vector<1x128xi32>
    %25 = arith.cmpi sge, %19, %24 : vector<1x128xi32>
    %c8_i32 = arith.constant 8 : i32
    %26 = vector.broadcast %c8_i32 : i32 to vector<1x128xi32>
    %27 = arith.cmpi sge, %19, %26 : vector<1x128xi32>
    %28 = tpu.iota {dimensions = array<i32: 0>} : vector<8x8xi32>
    %29 = tpu.iota {dimensions = array<i32: 1>} : vector<8x8xi32>
    %30 = arith.cmpi eq, %28, %29 : vector<8x8xi32>
    %31 = tpu.iota {dimensions = array<i32: 0>} : vector<16x16xi32>
    %32 = tpu.iota {dimensions = array<i32: 1>} : vector<16x16xi32>
    %33 = arith.cmpi eq, %31, %32 : vector<16x16xi32>
    %34 = vector.extract_strided_slice %1 {offsets = [0, 0], sizes = [8, 1], strides = [1, 1]} : vector<16x24xf32> to vector<8x1xf32>
    %35 = vector.extract_strided_slice %1 {offsets = [0, 1], sizes = [8, 1], strides = [1, 1]} : vector<16x24xf32> to vector<8x1xf32>
    %36 = vector.extract_strided_slice %1 {offsets = [0, 2], sizes = [8, 1], strides = [1, 1]} : vector<16x24xf32> to vector<8x1xf32>
    %37 = vector.extract_strided_slice %1 {offsets = [0, 3], sizes = [8, 1], strides = [1, 1]} : vector<16x24xf32> to vector<8x1xf32>
    %38 = vector.extract_strided_slice %1 {offsets = [0, 4], sizes = [16, 1], strides = [1, 1]} : vector<16x24xf32> to vector<16x1xf32>
    %39 = vector.extract_strided_slice %1 {offsets = [0, 5], sizes = [16, 1], strides = [1, 1]} : vector<16x24xf32> to vector<16x1xf32>
    %40 = vector.extract_strided_slice %1 {offsets = [0, 6], sizes = [16, 1], strides = [1, 1]} : vector<16x24xf32> to vector<16x1xf32>
    %41 = vector.extract_strided_slice %1 {offsets = [0, 7], sizes = [16, 1], strides = [1, 1]} : vector<16x24xf32> to vector<16x1xf32>
    %42 = vector.extract_strided_slice %2 {offsets = [0, 0], sizes = [16, 8], strides = [1, 1]} : vector<96x16xf32> to vector<16x8xf32>
    %43 = vector.extract_strided_slice %2 {offsets = [16, 0], sizes = [16, 16], strides = [1, 1]} : vector<96x16xf32> to vector<16x16xf32>
    %44 = vector.broadcast %36 : vector<8x1xf32> to vector<8x128xf32>
    %45 = arith.mulf %0, %44 : vector<8x128xf32>
    %c2_i32_9 = arith.constant 2 : i32
    %46 = tpu.dynamic_rotate %0 by %c2_i32_9 dim 1 : vector<8x128xf32>, i32 -> vector<8x128xf32>
    %cst = arith.constant 0.000000e+00 : f32
    %47 = vector.shape_cast %21 : vector<1x128xi1> to vector<1x128xi1>
    %48 = vector.broadcast %47 : vector<1x128xi1> to vector<8x128xi1>
    %49 = vector.broadcast %cst : f32 to vector<8x128xf32>
    %50 = arith.select %48, %46, %49 : vector<8x128xi1>, vector<8x128xf32>
    %51 = vector.broadcast %34 : vector<8x1xf32> to vector<8x128xf32>
    %52 = arith.mulf %50, %51 : vector<8x128xf32>
    %53 = arith.addf %45, %52 : vector<8x128xf32>
    %c1_i32_10 = arith.constant 1 : i32
    %54 = tpu.dynamic_rotate %0 by %c1_i32_10 dim 1 : vector<8x128xf32>, i32 -> vector<8x128xf32>
    %cst_11 = arith.constant 0.000000e+00 : f32
    %55 = vector.shape_cast %23 : vector<1x128xi1> to vector<1x128xi1>
    %56 = vector.broadcast %55 : vector<1x128xi1> to vector<8x128xi1>
    %57 = vector.broadcast %cst_11 : f32 to vector<8x128xf32>
    %58 = arith.select %56, %54, %57 : vector<8x128xi1>, vector<8x128xf32>
    %59 = vector.broadcast %35 : vector<8x1xf32> to vector<8x128xf32>
    %60 = arith.mulf %58, %59 : vector<8x128xf32>
    %61 = arith.addf %53, %60 : vector<8x128xf32>
    %cst_12 = arith.constant dense<0.000000e+00> : vector<8xf32>
    %62 = vector.multi_reduction <add>, %61, %cst_12 [1] : vector<8x128xf32> to vector<8xf32>
    %63 = vector.shape_cast %62 : vector<8xf32> to vector<8x1xf32>
    %cst_13 = arith.constant 1.280000e+02 : f32
    %64 = vector.broadcast %cst_13 : f32 to vector<8x1xf32>
    %65 = arith.divf %63, %64 : vector<8x1xf32>
    %66 = arith.mulf %61, %61 : vector<8x128xf32>
    %cst_14 = arith.constant dense<0.000000e+00> : vector<8xf32>
    %67 = vector.multi_reduction <add>, %66, %cst_14 [1] : vector<8x128xf32> to vector<8xf32>
    %68 = vector.shape_cast %67 : vector<8xf32> to vector<8x1xf32>
    %cst_15 = arith.constant 1.280000e+02 : f32
    %69 = vector.broadcast %cst_15 : f32 to vector<8x1xf32>
    %70 = arith.divf %68, %69 : vector<8x1xf32>
    %71 = arith.mulf %65, %65 : vector<8x1xf32>
    %72 = arith.subf %70, %71 : vector<8x1xf32>
    %cst_16 = arith.constant 0.000000e+00 : f32
    %73 = vector.broadcast %cst_16 : f32 to vector<8x1xf32>
    %74 = arith.maximumf %72, %73 : vector<8x1xf32>
    %cst_17 = arith.constant 9.99999974E-6 : f32
    %75 = vector.broadcast %cst_17 : f32 to vector<8x1xf32>
    %76 = arith.addf %74, %75 : vector<8x1xf32>
    %77 = math.rsqrt %76 : vector<8x1xf32>
    %78 = arith.mulf %37, %77 : vector<8x1xf32>
    %cst_18 = arith.constant 0.000000e+00 : f32
    %79 = vector.shape_cast %78 : vector<8x1xf32> to vector<8x1xf32>
    %80 = vector.broadcast %79 : vector<8x1xf32> to vector<8x8xf32>
    %81 = vector.broadcast %cst_18 : f32 to vector<8x8xf32>
    %82 = arith.select %30, %80, %81 : vector<8x8xi1>, vector<8x8xf32>
    %cst_19 = arith.constant dense<0.000000e+00> : vector<8xf32>
    %83 = vector.multi_reduction <add>, %82, %cst_19 [0] : vector<8x8xf32> to vector<8xf32>
    %84 = vector.shape_cast %83 : vector<8xf32> to vector<1x8xf32>
    %85 = vector.broadcast %84 : vector<1x8xf32> to vector<16x8xf32>
    %86 = arith.mulf %42, %85 : vector<16x8xf32>
    %cst_20 = arith.constant dense<0.000000e+00> : vector<16x128xf32>
    %87 = tpu.matmul %86, %61, %cst_20 {dimension_numbers = #tpu.dot_dimension_numbers<[1], [0], [0], [1], [0, 0, 1, 1], [], []>} : vector<16x8xf32>, vector<8x128xf32>, vector<16x128xf32> -> vector<16x128xf32>
    %cst_21 = arith.constant dense<0.000000e+00> : vector<16xf32>
    %88 = vector.multi_reduction <add>, %87, %cst_21 [1] : vector<16x128xf32> to vector<16xf32>
    %89 = vector.shape_cast %88 : vector<16xf32> to vector<16x1xf32>
    %cst_22 = arith.constant 1.280000e+02 : f32
    %90 = vector.broadcast %cst_22 : f32 to vector<16x1xf32>
    %91 = arith.divf %89, %90 : vector<16x1xf32>
    %92 = vector.broadcast %91 : vector<16x1xf32> to vector<16x128xf32>
    %93 = arith.subf %87, %92 : vector<16x128xf32>
    %94 = arith.mulf %93, %93 : vector<16x128xf32>
    %cst_23 = arith.constant dense<0.000000e+00> : vector<16xf32>
    %95 = vector.multi_reduction <add>, %94, %cst_23 [1] : vector<16x128xf32> to vector<16xf32>
    %96 = vector.shape_cast %95 : vector<16xf32> to vector<16x1xf32>
    %cst_24 = arith.constant 1.280000e+02 : f32
    %97 = vector.broadcast %cst_24 : f32 to vector<16x1xf32>
    %98 = arith.divf %96, %97 : vector<16x1xf32>
    %cst_25 = arith.constant 9.99999974E-6 : f32
    %99 = vector.broadcast %cst_25 : f32 to vector<16x1xf32>
    %100 = arith.addf %98, %99 : vector<16x1xf32>
    %101 = math.rsqrt %100 : vector<16x1xf32>
    %102 = arith.mulf %38, %101 : vector<16x1xf32>
    %103 = vector.broadcast %102 : vector<16x1xf32> to vector<16x128xf32>
    %104 = arith.mulf %103, %93 : vector<16x128xf32>
    %105 = vector.broadcast %39 : vector<16x1xf32> to vector<16x128xf32>
    %106 = arith.addf %104, %105 : vector<16x128xf32>
    %cst_26 = arith.constant 0.000000e+00 : f32
    %107 = vector.broadcast %cst_26 : f32 to vector<16x128xf32>
    %108 = arith.maximumf %106, %107 : vector<16x128xf32>
    %cst_27 = arith.constant dense<0.000000e+00> : vector<16x128xf32>
    %109 = tpu.matmul %43, %108, %cst_27 {dimension_numbers = #tpu.dot_dimension_numbers<[1], [0], [0], [1], [0, 0, 1, 1], [], []>} : vector<16x16xf32>, vector<16x128xf32>, vector<16x128xf32> -> vector<16x128xf32>
    %cst_28 = arith.constant dense<0.000000e+00> : vector<16xf32>
    %110 = vector.multi_reduction <add>, %109, %cst_28 [1] : vector<16x128xf32> to vector<16xf32>
    %111 = vector.shape_cast %110 : vector<16xf32> to vector<16x1xf32>
    %cst_29 = arith.constant 1.280000e+02 : f32
    %112 = vector.broadcast %cst_29 : f32 to vector<16x1xf32>
    %113 = arith.divf %111, %112 : vector<16x1xf32>
    %114 = vector.broadcast %113 : vector<16x1xf32> to vector<16x128xf32>
    %115 = arith.subf %109, %114 : vector<16x128xf32>
    %116 = arith.mulf %115, %115 : vector<16x128xf32>
    %cst_30 = arith.constant dense<0.000000e+00> : vector<16xf32>
    %117 = vector.multi_reduction <add>, %116, %cst_30 [1] : vector<16x128xf32> to vector<16xf32>
    %118 = vector.shape_cast %117 : vector<16xf32> to vector<16x1xf32>
    %cst_31 = arith.constant 1.280000e+02 : f32
    %119 = vector.broadcast %cst_31 : f32 to vector<16x1xf32>
    %120 = arith.divf %118, %119 : vector<16x1xf32>
    %cst_32 = arith.constant 9.99999974E-6 : f32
    %121 = vector.broadcast %cst_32 : f32 to vector<16x1xf32>
    %122 = arith.addf %120, %121 : vector<16x1xf32>
    %123 = math.rsqrt %122 : vector<16x1xf32>
    %124 = arith.mulf %40, %123 : vector<16x1xf32>
    %125 = vector.broadcast %124 : vector<16x1xf32> to vector<16x128xf32>
    %126 = arith.mulf %125, %115 : vector<16x128xf32>
    %127 = vector.broadcast %41 : vector<16x1xf32> to vector<16x128xf32>
    %128 = arith.addf %126, %127 : vector<16x128xf32>
    %cst_33 = arith.constant 0.000000e+00 : f32
    %129 = vector.broadcast %cst_33 : f32 to vector<16x128xf32>
    %130 = arith.maximumf %128, %129 : vector<16x128xf32>
    %131 = vector.extract_strided_slice %1 {offsets = [0, 8], sizes = [16, 1], strides = [1, 1]} : vector<16x24xf32> to vector<16x1xf32>
    %132 = vector.extract_strided_slice %1 {offsets = [0, 9], sizes = [16, 1], strides = [1, 1]} : vector<16x24xf32> to vector<16x1xf32>
    %133 = vector.extract_strided_slice %1 {offsets = [0, 10], sizes = [16, 1], strides = [1, 1]} : vector<16x24xf32> to vector<16x1xf32>
    %134 = vector.extract_strided_slice %1 {offsets = [0, 11], sizes = [16, 1], strides = [1, 1]} : vector<16x24xf32> to vector<16x1xf32>
    %135 = vector.extract_strided_slice %1 {offsets = [0, 12], sizes = [16, 1], strides = [1, 1]} : vector<16x24xf32> to vector<16x1xf32>
    %136 = vector.extract_strided_slice %1 {offsets = [0, 13], sizes = [16, 1], strides = [1, 1]} : vector<16x24xf32> to vector<16x1xf32>
    %137 = vector.extract_strided_slice %1 {offsets = [0, 14], sizes = [16, 1], strides = [1, 1]} : vector<16x24xf32> to vector<16x1xf32>
    %138 = vector.extract_strided_slice %1 {offsets = [0, 15], sizes = [16, 1], strides = [1, 1]} : vector<16x24xf32> to vector<16x1xf32>
    %139 = vector.extract_strided_slice %2 {offsets = [32, 0], sizes = [16, 16], strides = [1, 1]} : vector<96x16xf32> to vector<16x16xf32>
    %140 = vector.extract_strided_slice %2 {offsets = [48, 0], sizes = [16, 16], strides = [1, 1]} : vector<96x16xf32> to vector<16x16xf32>
    %141 = vector.broadcast %133 : vector<16x1xf32> to vector<16x128xf32>
    %142 = arith.mulf %130, %141 : vector<16x128xf32>
    %c4_i32_34 = arith.constant 4 : i32
    %143 = tpu.dynamic_rotate %130 by %c4_i32_34 dim 1 : vector<16x128xf32>, i32 -> vector<16x128xf32>
    %cst_35 = arith.constant 0.000000e+00 : f32
    %144 = vector.shape_cast %25 : vector<1x128xi1> to vector<1x128xi1>
    %145 = vector.broadcast %144 : vector<1x128xi1> to vector<16x128xi1>
    %146 = vector.broadcast %cst_35 : f32 to vector<16x128xf32>
    %147 = arith.select %145, %143, %146 : vector<16x128xi1>, vector<16x128xf32>
    %148 = vector.broadcast %131 : vector<16x1xf32> to vector<16x128xf32>
    %149 = arith.mulf %147, %148 : vector<16x128xf32>
    %150 = arith.addf %142, %149 : vector<16x128xf32>
    %c2_i32_36 = arith.constant 2 : i32
    %151 = tpu.dynamic_rotate %130 by %c2_i32_36 dim 1 : vector<16x128xf32>, i32 -> vector<16x128xf32>
    %cst_37 = arith.constant 0.000000e+00 : f32
    %152 = vector.shape_cast %21 : vector<1x128xi1> to vector<1x128xi1>
    %153 = vector.broadcast %152 : vector<1x128xi1> to vector<16x128xi1>
    %154 = vector.broadcast %cst_37 : f32 to vector<16x128xf32>
    %155 = arith.select %153, %151, %154 : vector<16x128xi1>, vector<16x128xf32>
    %156 = vector.broadcast %132 : vector<16x1xf32> to vector<16x128xf32>
    %157 = arith.mulf %155, %156 : vector<16x128xf32>
    %158 = arith.addf %150, %157 : vector<16x128xf32>
    %cst_38 = arith.constant dense<0.000000e+00> : vector<16xf32>
    %159 = vector.multi_reduction <add>, %158, %cst_38 [1] : vector<16x128xf32> to vector<16xf32>
    %160 = vector.shape_cast %159 : vector<16xf32> to vector<16x1xf32>
    %cst_39 = arith.constant 1.280000e+02 : f32
    %161 = vector.broadcast %cst_39 : f32 to vector<16x1xf32>
    %162 = arith.divf %160, %161 : vector<16x1xf32>
    %163 = arith.mulf %158, %158 : vector<16x128xf32>
    %cst_40 = arith.constant dense<0.000000e+00> : vector<16xf32>
    %164 = vector.multi_reduction <add>, %163, %cst_40 [1] : vector<16x128xf32> to vector<16xf32>
    %165 = vector.shape_cast %164 : vector<16xf32> to vector<16x1xf32>
    %cst_41 = arith.constant 1.280000e+02 : f32
    %166 = vector.broadcast %cst_41 : f32 to vector<16x1xf32>
    %167 = arith.divf %165, %166 : vector<16x1xf32>
    %168 = arith.mulf %162, %162 : vector<16x1xf32>
    %169 = arith.subf %167, %168 : vector<16x1xf32>
    %cst_42 = arith.constant 0.000000e+00 : f32
    %170 = vector.broadcast %cst_42 : f32 to vector<16x1xf32>
    %171 = arith.maximumf %169, %170 : vector<16x1xf32>
    %cst_43 = arith.constant 9.99999974E-6 : f32
    %172 = vector.broadcast %cst_43 : f32 to vector<16x1xf32>
    %173 = arith.addf %171, %172 : vector<16x1xf32>
    %174 = math.rsqrt %173 : vector<16x1xf32>
    %175 = arith.mulf %134, %174 : vector<16x1xf32>
    %cst_44 = arith.constant 0.000000e+00 : f32
    %176 = vector.shape_cast %175 : vector<16x1xf32> to vector<16x1xf32>
    %177 = vector.broadcast %176 : vector<16x1xf32> to vector<16x16xf32>
    %178 = vector.broadcast %cst_44 : f32 to vector<16x16xf32>
    %179 = arith.select %33, %177, %178 : vector<16x16xi1>, vector<16x16xf32>
    %cst_45 = arith.constant dense<0.000000e+00> : vector<16xf32>
    %180 = vector.multi_reduction <add>, %179, %cst_45 [0] : vector<16x16xf32> to vector<16xf32>
    %181 = vector.shape_cast %180 : vector<16xf32> to vector<1x16xf32>
    %182 = vector.broadcast %181 : vector<1x16xf32> to vector<16x16xf32>
    %183 = arith.mulf %139, %182 : vector<16x16xf32>
    %cst_46 = arith.constant dense<0.000000e+00> : vector<16x128xf32>
    %184 = tpu.matmul %183, %158, %cst_46 {dimension_numbers = #tpu.dot_dimension_numbers<[1], [0], [0], [1], [0, 0, 1, 1], [], []>} : vector<16x16xf32>, vector<16x128xf32>, vector<16x128xf32> -> vector<16x128xf32>
    %cst_47 = arith.constant dense<0.000000e+00> : vector<16xf32>
    %185 = vector.multi_reduction <add>, %184, %cst_47 [1] : vector<16x128xf32> to vector<16xf32>
    %186 = vector.shape_cast %185 : vector<16xf32> to vector<16x1xf32>
    %cst_48 = arith.constant 1.280000e+02 : f32
    %187 = vector.broadcast %cst_48 : f32 to vector<16x1xf32>
    %188 = arith.divf %186, %187 : vector<16x1xf32>
    %189 = vector.broadcast %188 : vector<16x1xf32> to vector<16x128xf32>
    %190 = arith.subf %184, %189 : vector<16x128xf32>
    %191 = arith.mulf %190, %190 : vector<16x128xf32>
    %cst_49 = arith.constant dense<0.000000e+00> : vector<16xf32>
    %192 = vector.multi_reduction <add>, %191, %cst_49 [1] : vector<16x128xf32> to vector<16xf32>
    %193 = vector.shape_cast %192 : vector<16xf32> to vector<16x1xf32>
    %cst_50 = arith.constant 1.280000e+02 : f32
    %194 = vector.broadcast %cst_50 : f32 to vector<16x1xf32>
    %195 = arith.divf %193, %194 : vector<16x1xf32>
    %cst_51 = arith.constant 9.99999974E-6 : f32
    %196 = vector.broadcast %cst_51 : f32 to vector<16x1xf32>
    %197 = arith.addf %195, %196 : vector<16x1xf32>
    %198 = math.rsqrt %197 : vector<16x1xf32>
    %199 = arith.mulf %135, %198 : vector<16x1xf32>
    %200 = vector.broadcast %199 : vector<16x1xf32> to vector<16x128xf32>
    %201 = arith.mulf %200, %190 : vector<16x128xf32>
    %202 = vector.broadcast %136 : vector<16x1xf32> to vector<16x128xf32>
    %203 = arith.addf %201, %202 : vector<16x128xf32>
    %cst_52 = arith.constant 0.000000e+00 : f32
    %204 = vector.broadcast %cst_52 : f32 to vector<16x128xf32>
    %205 = arith.maximumf %203, %204 : vector<16x128xf32>
    %cst_53 = arith.constant dense<0.000000e+00> : vector<16x128xf32>
    %206 = tpu.matmul %140, %205, %cst_53 {dimension_numbers = #tpu.dot_dimension_numbers<[1], [0], [0], [1], [0, 0, 1, 1], [], []>} : vector<16x16xf32>, vector<16x128xf32>, vector<16x128xf32> -> vector<16x128xf32>
    %cst_54 = arith.constant dense<0.000000e+00> : vector<16xf32>
    %207 = vector.multi_reduction <add>, %206, %cst_54 [1] : vector<16x128xf32> to vector<16xf32>
    %208 = vector.shape_cast %207 : vector<16xf32> to vector<16x1xf32>
    %cst_55 = arith.constant 1.280000e+02 : f32
    %209 = vector.broadcast %cst_55 : f32 to vector<16x1xf32>
    %210 = arith.divf %208, %209 : vector<16x1xf32>
    %211 = vector.broadcast %210 : vector<16x1xf32> to vector<16x128xf32>
    %212 = arith.subf %206, %211 : vector<16x128xf32>
    %213 = arith.mulf %212, %212 : vector<16x128xf32>
    %cst_56 = arith.constant dense<0.000000e+00> : vector<16xf32>
    %214 = vector.multi_reduction <add>, %213, %cst_56 [1] : vector<16x128xf32> to vector<16xf32>
    %215 = vector.shape_cast %214 : vector<16xf32> to vector<16x1xf32>
    %cst_57 = arith.constant 1.280000e+02 : f32
    %216 = vector.broadcast %cst_57 : f32 to vector<16x1xf32>
    %217 = arith.divf %215, %216 : vector<16x1xf32>
    %cst_58 = arith.constant 9.99999974E-6 : f32
    %218 = vector.broadcast %cst_58 : f32 to vector<16x1xf32>
    %219 = arith.addf %217, %218 : vector<16x1xf32>
    %220 = math.rsqrt %219 : vector<16x1xf32>
    %221 = arith.mulf %137, %220 : vector<16x1xf32>
    %222 = vector.broadcast %221 : vector<16x1xf32> to vector<16x128xf32>
    %223 = arith.mulf %222, %212 : vector<16x128xf32>
    %224 = vector.broadcast %138 : vector<16x1xf32> to vector<16x128xf32>
    %225 = arith.addf %223, %224 : vector<16x128xf32>
    %226 = arith.addf %225, %130 : vector<16x128xf32>
    %cst_59 = arith.constant 0.000000e+00 : f32
    %227 = vector.broadcast %cst_59 : f32 to vector<16x128xf32>
    %228 = arith.maximumf %226, %227 : vector<16x128xf32>
    %229 = vector.extract_strided_slice %1 {offsets = [0, 16], sizes = [16, 1], strides = [1, 1]} : vector<16x24xf32> to vector<16x1xf32>
    %230 = vector.extract_strided_slice %1 {offsets = [0, 17], sizes = [16, 1], strides = [1, 1]} : vector<16x24xf32> to vector<16x1xf32>
    %231 = vector.extract_strided_slice %1 {offsets = [0, 18], sizes = [16, 1], strides = [1, 1]} : vector<16x24xf32> to vector<16x1xf32>
    %232 = vector.extract_strided_slice %1 {offsets = [0, 19], sizes = [16, 1], strides = [1, 1]} : vector<16x24xf32> to vector<16x1xf32>
    %233 = vector.extract_strided_slice %1 {offsets = [0, 20], sizes = [16, 1], strides = [1, 1]} : vector<16x24xf32> to vector<16x1xf32>
    %234 = vector.extract_strided_slice %1 {offsets = [0, 21], sizes = [16, 1], strides = [1, 1]} : vector<16x24xf32> to vector<16x1xf32>
    %235 = vector.extract_strided_slice %1 {offsets = [0, 22], sizes = [16, 1], strides = [1, 1]} : vector<16x24xf32> to vector<16x1xf32>
    %236 = vector.extract_strided_slice %1 {offsets = [0, 23], sizes = [16, 1], strides = [1, 1]} : vector<16x24xf32> to vector<16x1xf32>
    %237 = vector.extract_strided_slice %2 {offsets = [64, 0], sizes = [16, 16], strides = [1, 1]} : vector<96x16xf32> to vector<16x16xf32>
    %238 = vector.extract_strided_slice %2 {offsets = [80, 0], sizes = [16, 16], strides = [1, 1]} : vector<96x16xf32> to vector<16x16xf32>
    %239 = vector.broadcast %231 : vector<16x1xf32> to vector<16x128xf32>
    %240 = arith.mulf %228, %239 : vector<16x128xf32>
    %c8_i32_60 = arith.constant 8 : i32
    %241 = tpu.dynamic_rotate %228 by %c8_i32_60 dim 1 : vector<16x128xf32>, i32 -> vector<16x128xf32>
    %cst_61 = arith.constant 0.000000e+00 : f32
    %242 = vector.shape_cast %27 : vector<1x128xi1> to vector<1x128xi1>
    %243 = vector.broadcast %242 : vector<1x128xi1> to vector<16x128xi1>
    %244 = vector.broadcast %cst_61 : f32 to vector<16x128xf32>
    %245 = arith.select %243, %241, %244 : vector<16x128xi1>, vector<16x128xf32>
    %246 = vector.broadcast %229 : vector<16x1xf32> to vector<16x128xf32>
    %247 = arith.mulf %245, %246 : vector<16x128xf32>
    %248 = arith.addf %240, %247 : vector<16x128xf32>
    %c4_i32_62 = arith.constant 4 : i32
    %249 = tpu.dynamic_rotate %228 by %c4_i32_62 dim 1 : vector<16x128xf32>, i32 -> vector<16x128xf32>
    %cst_63 = arith.constant 0.000000e+00 : f32
    %250 = vector.shape_cast %25 : vector<1x128xi1> to vector<1x128xi1>
    %251 = vector.broadcast %250 : vector<1x128xi1> to vector<16x128xi1>
    %252 = vector.broadcast %cst_63 : f32 to vector<16x128xf32>
    %253 = arith.select %251, %249, %252 : vector<16x128xi1>, vector<16x128xf32>
    %254 = vector.broadcast %230 : vector<16x1xf32> to vector<16x128xf32>
    %255 = arith.mulf %253, %254 : vector<16x128xf32>
    %256 = arith.addf %248, %255 : vector<16x128xf32>
    %cst_64 = arith.constant dense<0.000000e+00> : vector<16xf32>
    %257 = vector.multi_reduction <add>, %256, %cst_64 [1] : vector<16x128xf32> to vector<16xf32>
    %258 = vector.shape_cast %257 : vector<16xf32> to vector<16x1xf32>
    %cst_65 = arith.constant 1.280000e+02 : f32
    %259 = vector.broadcast %cst_65 : f32 to vector<16x1xf32>
    %260 = arith.divf %258, %259 : vector<16x1xf32>
    %261 = arith.mulf %256, %256 : vector<16x128xf32>
    %cst_66 = arith.constant dense<0.000000e+00> : vector<16xf32>
    %262 = vector.multi_reduction <add>, %261, %cst_66 [1] : vector<16x128xf32> to vector<16xf32>
    %263 = vector.shape_cast %262 : vector<16xf32> to vector<16x1xf32>
    %cst_67 = arith.constant 1.280000e+02 : f32
    %264 = vector.broadcast %cst_67 : f32 to vector<16x1xf32>
    %265 = arith.divf %263, %264 : vector<16x1xf32>
    %266 = arith.mulf %260, %260 : vector<16x1xf32>
    %267 = arith.subf %265, %266 : vector<16x1xf32>
    %cst_68 = arith.constant 0.000000e+00 : f32
    %268 = vector.broadcast %cst_68 : f32 to vector<16x1xf32>
    %269 = arith.maximumf %267, %268 : vector<16x1xf32>
    %cst_69 = arith.constant 9.99999974E-6 : f32
    %270 = vector.broadcast %cst_69 : f32 to vector<16x1xf32>
    %271 = arith.addf %269, %270 : vector<16x1xf32>
    %272 = math.rsqrt %271 : vector<16x1xf32>
    %273 = arith.mulf %232, %272 : vector<16x1xf32>
    %cst_70 = arith.constant 0.000000e+00 : f32
    %274 = vector.shape_cast %273 : vector<16x1xf32> to vector<16x1xf32>
    %275 = vector.broadcast %274 : vector<16x1xf32> to vector<16x16xf32>
    %276 = vector.broadcast %cst_70 : f32 to vector<16x16xf32>
    %277 = arith.select %33, %275, %276 : vector<16x16xi1>, vector<16x16xf32>
    %cst_71 = arith.constant dense<0.000000e+00> : vector<16xf32>
    %278 = vector.multi_reduction <add>, %277, %cst_71 [0] : vector<16x16xf32> to vector<16xf32>
    %279 = vector.shape_cast %278 : vector<16xf32> to vector<1x16xf32>
    %280 = vector.broadcast %279 : vector<1x16xf32> to vector<16x16xf32>
    %281 = arith.mulf %237, %280 : vector<16x16xf32>
    %cst_72 = arith.constant dense<0.000000e+00> : vector<16x128xf32>
    %282 = tpu.matmul %281, %256, %cst_72 {dimension_numbers = #tpu.dot_dimension_numbers<[1], [0], [0], [1], [0, 0, 1, 1], [], []>} : vector<16x16xf32>, vector<16x128xf32>, vector<16x128xf32> -> vector<16x128xf32>
    %cst_73 = arith.constant dense<0.000000e+00> : vector<16xf32>
    %283 = vector.multi_reduction <add>, %282, %cst_73 [1] : vector<16x128xf32> to vector<16xf32>
    %284 = vector.shape_cast %283 : vector<16xf32> to vector<16x1xf32>
    %cst_74 = arith.constant 1.280000e+02 : f32
    %285 = vector.broadcast %cst_74 : f32 to vector<16x1xf32>
    %286 = arith.divf %284, %285 : vector<16x1xf32>
    %287 = vector.broadcast %286 : vector<16x1xf32> to vector<16x128xf32>
    %288 = arith.subf %282, %287 : vector<16x128xf32>
    %289 = arith.mulf %288, %288 : vector<16x128xf32>
    %cst_75 = arith.constant dense<0.000000e+00> : vector<16xf32>
    %290 = vector.multi_reduction <add>, %289, %cst_75 [1] : vector<16x128xf32> to vector<16xf32>
    %291 = vector.shape_cast %290 : vector<16xf32> to vector<16x1xf32>
    %cst_76 = arith.constant 1.280000e+02 : f32
    %292 = vector.broadcast %cst_76 : f32 to vector<16x1xf32>
    %293 = arith.divf %291, %292 : vector<16x1xf32>
    %cst_77 = arith.constant 9.99999974E-6 : f32
    %294 = vector.broadcast %cst_77 : f32 to vector<16x1xf32>
    %295 = arith.addf %293, %294 : vector<16x1xf32>
    %296 = math.rsqrt %295 : vector<16x1xf32>
    %297 = arith.mulf %233, %296 : vector<16x1xf32>
    %298 = vector.broadcast %297 : vector<16x1xf32> to vector<16x128xf32>
    %299 = arith.mulf %298, %288 : vector<16x128xf32>
    %300 = vector.broadcast %234 : vector<16x1xf32> to vector<16x128xf32>
    %301 = arith.addf %299, %300 : vector<16x128xf32>
    %cst_78 = arith.constant 0.000000e+00 : f32
    %302 = vector.broadcast %cst_78 : f32 to vector<16x128xf32>
    %303 = arith.maximumf %301, %302 : vector<16x128xf32>
    %cst_79 = arith.constant dense<0.000000e+00> : vector<16x128xf32>
    %304 = tpu.matmul %238, %303, %cst_79 {dimension_numbers = #tpu.dot_dimension_numbers<[1], [0], [0], [1], [0, 0, 1, 1], [], []>} : vector<16x16xf32>, vector<16x128xf32>, vector<16x128xf32> -> vector<16x128xf32>
    %cst_80 = arith.constant dense<0.000000e+00> : vector<16xf32>
    %305 = vector.multi_reduction <add>, %304, %cst_80 [1] : vector<16x128xf32> to vector<16xf32>
    %306 = vector.shape_cast %305 : vector<16xf32> to vector<16x1xf32>
    %cst_81 = arith.constant 1.280000e+02 : f32
    %307 = vector.broadcast %cst_81 : f32 to vector<16x1xf32>
    %308 = arith.divf %306, %307 : vector<16x1xf32>
    %309 = vector.broadcast %308 : vector<16x1xf32> to vector<16x128xf32>
    %310 = arith.subf %304, %309 : vector<16x128xf32>
    %311 = arith.mulf %310, %310 : vector<16x128xf32>
    %cst_82 = arith.constant dense<0.000000e+00> : vector<16xf32>
    %312 = vector.multi_reduction <add>, %311, %cst_82 [1] : vector<16x128xf32> to vector<16xf32>
    %313 = vector.shape_cast %312 : vector<16xf32> to vector<16x1xf32>
    %cst_83 = arith.constant 1.280000e+02 : f32
    %314 = vector.broadcast %cst_83 : f32 to vector<16x1xf32>
    %315 = arith.divf %313, %314 : vector<16x1xf32>
    %cst_84 = arith.constant 9.99999974E-6 : f32
    %316 = vector.broadcast %cst_84 : f32 to vector<16x1xf32>
    %317 = arith.addf %315, %316 : vector<16x1xf32>
    %318 = math.rsqrt %317 : vector<16x1xf32>
    %319 = arith.mulf %235, %318 : vector<16x1xf32>
    %320 = vector.broadcast %319 : vector<16x1xf32> to vector<16x128xf32>
    %321 = arith.mulf %320, %310 : vector<16x128xf32>
    %322 = vector.broadcast %236 : vector<16x1xf32> to vector<16x128xf32>
    %323 = arith.addf %321, %322 : vector<16x128xf32>
    %324 = arith.addf %323, %228 : vector<16x128xf32>
    %cst_85 = arith.constant 0.000000e+00 : f32
    %325 = vector.broadcast %cst_85 : f32 to vector<16x128xf32>
    %326 = arith.maximumf %324, %325 : vector<16x128xf32>
    %c0_86 = arith.constant 0 : index
    %c0_87 = arith.constant 0 : index
    %327 = vector.load %arg3[%c0_86, %c0_87] : memref<16x128xf32, #tpu.memory_space<vmem>>, vector<16x128xf32>
    tpu.vector_store %arg3[%c0_86, %c0_87], %326 {strides = array<i32>} : memref<16x128xf32, #tpu.memory_space<vmem>>, vector<16x128xf32>,
    return
  }
}

</mosaic_0001>

<llo_original>
// kernel: tpu_custom_call.1
$region0: #{tpu_custom_call.1}
  #allocation0 [shape = 'u32[]', space=smem, size = 0x4, offset = 0x4, fixed_abs, tag = 'smem constant byte address 0x4 - core index']
  #allocation1 [shape = 'u32[144,128]{1,0:T(1,128)}', space=vmem, size = 0x12000, scoped, tag = 'internal scratch']
  %s0 = inlined_call_operand.vmem [shape: f32[8,128], index: 0, kind: input, shape index: {}]
  %s1 = inlined_call_operand.vmem [shape: f32[16,24], index: 1, kind: input, shape index: {}]
  %s2 = inlined_call_operand.vmem [shape: f32[96,16], index: 2, kind: input, shape index: {}]
  %s3 = inlined_call_operand.hbm [shape: f32[16,128], index: 3, kind: output, shape index: {}]
  %s4 = sld [smem:[#allocation0]]
  $region22: #{tpu_custom_call.1} parent=0
    _
  %s6 = ssub.s32 1, %s4
  %s7 = scalar_select 0, %s6, %s4
  $region1: #{tpu_custom_call.1} parent=0
    #allocation2 [shape = 'u8[8192]{0}', space=vmem, size = 0x2000, scoped, tag = 'output window, operand 0, single buffered']
    #allocation3 [shape = 's32[1]{0}', space=sflag, size = 0x4, scoped, tag = 'scoped memory for tpu_custom_call.1']
    %8 = vsyncpa [#allocation3], 0
    // Predicated region
    $region2: #{tpu_custom_call.1} parent=1 // pred_check
      _
    $region3: #{tpu_custom_call.1} parent=1 // pred_check_branch
      %10 = sbr.rel (0) target = $region5
    $region4: #{tpu_custom_call.1} parent=1 // pred_region
      _
    $region5: #{tpu_custom_call.1} parent=1 // pred_fallthru
      _
    // Predicated region
    $region6: #{tpu_custom_call.1} parent=1 // pred_check
      _
    $region7: #{tpu_custom_call.1} parent=1 // pred_check_branch
      %12 = sbr.rel (0) target = $region9
    $region8: #{tpu_custom_call.1} parent=1 // pred_region
      _
    $region9: #{tpu_custom_call.1} parent=1 // pred_fallthru
      _
    // Predicated region
    $region10: #{tpu_custom_call.1} parent=1 // pred_check
      _
    $region11: #{tpu_custom_call.1} parent=1 // pred_check_branch
      %14 = sbr.rel (0) target = $region13
    $region12: #{tpu_custom_call.1} parent=1 // pred_region
      _
    $region13: #{tpu_custom_call.1} parent=1 // pred_fallthru
      _
    %v15 = vld [vmem:[%s0] sm:$0xff]
    %v16 = vld [vmem:[%s1] sm:$0xff]
    %v17 = vld [vmem:[%s1 + $0x8] sm:$0xff]
    %v18 = vld [vmem:[%s2] sm:$0xff]
    %v19 = vld [vmem:[%s2 + $0x8] sm:$0xff]
    %v20 = vld [vmem:[%s2 + $0x10] sm:$0xff]
    %v21 = vld [vmem:[%s2 + $0x18] sm:$0xff]
    %v22 = vld [vmem:[%s2 + $0x20] sm:$0xff]
    %v23 = vld [vmem:[%s2 + $0x28] sm:$0xff]
    %v24 = vld [vmem:[%s2 + $0x30] sm:$0xff]
    %v25 = vld [vmem:[%s2 + $0x38] sm:$0xff]
    %v26 = vld [vmem:[%s2 + $0x40] sm:$0xff]
    %v27 = vld [vmem:[%s2 + $0x48] sm:$0xff]
    %v28 = vld [vmem:[%s2 + $0x50] sm:$0xff]
    %v29 = vld [vmem:[%s2 + $0x58] sm:$0xff]
    %v30 = vlaneseq
    %v31 = vand.u32 %v30, 127
    %vm32 = vcmp.lt.s32.totalorder %v31, 0
    %v33 = vsub.s32 0, %v31
    %v34 = vsel %vm32, %v33, %v31
    %v35 = vshrl.u32 %v34, 6
    %v36 = vand.u32 %v34, 63
    %v37 = vsub.s32 0, %v36
    %v38 = vsel %vm32, %v37, %v36
    %vm39 = vcmp.ne.s32.totalorder %v38, 0
    %vm40 = vcmp.lt.s32.totalorder %v38, 0
    %vm41 = vmand %vm40, %vm39
    %v42 = vadd.s32 %v38, 64
    %v43 = vsel %vm41, %v42, %v38
    %vm44 = vcmp.ge.s32.totalorder %v43, 2
    %vm45 = vcmp.ge.s32.totalorder %v43, 1
    %vm46 = vcmp.ge.s32.totalorder %v43, 4
    %vm47 = vcmp.ge.s32.totalorder %v43, 8
    %v48 = vlaneseq
    %v49 = vshrl.u32 %v48, 7
    %vm50 = vcmp.eq.s32.totalorder %v49, %v31
    %v51 = vadd.s32 %v49, 8
    %vm52 = vcmp.eq.s32.totalorder %v51, %v31
    %54 = vset.pattern.permute.xlu0 2
    %55 = vperm.xlu0 %54, %v16
    %v56 = vpop.permute.xlu0 %55
    %v58 = vmul.f32 %v15, %v56
    %59 = vrot.lane.b32.xlu0 %v15, 2
    %v60 = vpop.permute.xlu0 %59
    %v61 = vsel %vm44, 1, 0
    %vm62 = vcmp.eq.s32.totalorder %v61, 1
    %v63 = vsel %vm62, %v60, 0.0
    %64 = vset.pattern.permute.xlu0 0
    %65 = vperm.xlu0 %64, %v16
    %v66 = vpop.permute.xlu0 %65
    %v68 = vmul.f32 %v63, %v66
    %v69 = vadd.f32 %v58, %v68
    %70 = vrot.lane.b32.xlu0 %v15, 1
    %v71 = vpop.permute.xlu0 %70
    %v72 = vsel %vm45, 1, 0
    %vm73 = vcmp.eq.s32.totalorder %v72, 1
    %v74 = vsel %vm73, %v71, 0.0
    %75 = vset.pattern.permute.xlu0 1
    %76 = vperm.xlu0 %75, %v16
    %v77 = vpop.permute.xlu0 %76
    %v79 = vmul.f32 %v74, %v77
    %v80 = vadd.f32 %v69, %v79
    %81 = vadd.xlane.f32.xlu0 %v80
    %v82 = vpop.xlane.xlu0 %81
    %v83 = vrcp.pop 128.0
    %v84 = vmul.f32 %v82, %v83
    %v85 = vmul.f32 %v80, %v80
    %86 = vadd.xlane.f32.xlu0 %v85
    %v87 = vpop.xlane.xlu0 %86
    %v88 = vmul.f32 %v87, %v83
    %v89 = vmul.f32 %v84, %v84
    %v90 = vsub.f32 %v88, %v89
    %v91 = vmax.f32 %v90, 0.0
    %v92 = vadd.f32 %v91, 1e-05
    %v93 = vrsqrt.pop %v92
    %v94 = vmul.f32 %v16, %v93
    %96 = vset.pattern.permute.xlu0 3
    %97 = vperm.xlu0 %96, %v94
    %v98 = vpop.permute.xlu0 %97
    %v100 = vsel %vm50, %v98, 0.0
    %vm101 = vcmask 64512
    %v102 = vsel %vm101, %v100, 0.0
    %v103 = vrot.slane %v102, 4
    %v104 = vadd.f32 %v102, %v103
    %v105 = vrot.slane %v104, 2
    %v106 = vadd.f32 %v104, %v105
    %v107 = vrot.slane %v106, 1
    %v108 = vadd.f32 %v106, %v107
    %v109 = vmul.f32 %v18, %v108
    %v110 = vmul.f32 %v19, %v108
    %v112 = vsel %vm101, %v109, 0
    %v115 = vsel %vm101, %v110, 0
    %117 = vmatprep.subr.mxu0 0.0
    %118 = vmatpush1.msra.mxu0 0.0
    %119 = vmatprep.subr.mxu0 0.0
    %120 = vmatpush1.msra.mxu0 0.0
    %121 = vmatprep.subr.mxu0 0.0
    %122 = vmatpush1.msra.mxu0 0.0
    %123 = vmatprep.subr.mxu0 0.0
    %124 = vmatpush1.msra.mxu0 0.0
    %125 = vmatprep.subr.mxu0 0.0
    %126 = vmatpush1.msra.mxu0 0.0
    %127 = vmatprep.subr.mxu0 0.0
    %128 = vmatpush1.msra.mxu0 0.0
    %129 = vmatprep.subr.mxu0 0.0
    %130 = vmatpush1.msra.mxu0 0.0
    %131 = vmatprep.subr.mxu0 0.0
    %132 = vmatpush1.msra.mxu0 0.0
    %133 = vmatprep.subr.mxu0 0.0
    %134 = vmatpush1.msra.mxu0 0.0
    %135 = vmatprep.subr.mxu0 0.0
    %136 = vmatpush1.msra.mxu0 0.0
    %137 = vmatprep.subr.mxu0 0.0
    %138 = vmatpush1.msra.mxu0 0.0
    %139 = vmatprep.subr.mxu0 0.0
    %140 = vmatpush1.msra.mxu0 0.0
    %141 = vmatprep.subr.mxu0 0.0
    %142 = vmatpush1.msra.mxu0 0.0
    %143 = vmatprep.subr.mxu0 0.0
    %144 = vmatpush1.msra.mxu0 0.0
    %145 = vmatprep.subr.mxu0 0.0
    %146 = vmatpush1.msra.mxu0 0.0
    %147 = vmatprep.subr.mxu0 0.0
    %148 = vmatpush1.msra.mxu0 %v80
    %149 = vmatprep.subr.mxu0 0.0
    %150 = vmatpush2.msra.mxu0 0.0
    %151 = vmatprep.subr.mxu0 0.0
    %152 = vmatpush2.msra.mxu0 0.0
    %153 = vmatprep.subr.mxu0 0.0
    %154 = vmatpush2.msra.mxu0 0.0
    %155 = vmatprep.subr.mxu0 0.0
    %156 = vmatpush2.msra.mxu0 0.0
    %157 = vmatprep.subr.mxu0 0.0
    %158 = vmatpush2.msra.mxu0 0.0
    %159 = vmatprep.subr.mxu0 0.0
    %160 = vmatpush2.msra.mxu0 0.0
    %161 = vmatprep.subr.mxu0 0.0
    %162 = vmatpush2.msra.mxu0 0.0
    %163 = vmatprep.subr.mxu0 0.0
    %164 = vmatpush2.msra.mxu0 0.0
    %165 = vmatprep.subr.mxu0 0.0
    %166 = vmatpush2.msra.mxu0 0.0
    %167 = vmatprep.subr.mxu0 0.0
    %168 = vmatpush2.msra.mxu0 0.0
    %169 = vmatprep.subr.mxu0 0.0
    %170 = vmatpush2.msra.mxu0 0.0
    %171 = vmatprep.subr.mxu0 0.0
    %172 = vmatpush2.msra.mxu0 0.0
    %173 = vmatprep.subr.mxu0 0.0
    %174 = vmatpush2.msra.mxu0 0.0
    %175 = vmatprep.subr.mxu0 0.0
    %176 = vmatpush2.msra.mxu0 0.0
    %177 = vmatprep.subr.mxu0 0.0
    %178 = vmatpush2.msra.mxu0 0.0
    %179 = vmatprep.subr.mxu0 0.0
    %180 = vmatpush2.msra.mxu0 0.0
    %181 = vmatprep.mubr.f32.mxu0 0.0
    %182 = vmatmul.mubr.f32.gmra.mxu0 %v112
    %v183 = vpop.f32.mrf.mxu0
    %v184 = vadd.f32 0.0, %v183
    %v185 = vpop.f32.mrf.mxu0
    %186 = vmatprep.mubr.f32.mxu0 0.0
    %187 = vmatmul.mubr.f32.gmra.mxu0 %v115
    %v188 = vpop.f32.mrf.mxu0
    %v189 = vadd.f32 0.0, %v188
    %v190 = vpop.f32.mrf.mxu0
    %191 = vdwg.mxu0
    %192 = vadd.xlane.f32.xlu0 %v184
    %v193 = vpop.xlane.xlu0 %192
    %194 = vadd.xlane.f32.xlu0 %v189
    %v195 = vpop.xlane.xlu0 %194
    %v196 = vmul.f32 %v193, %v83
    %v197 = vmul.f32 %v195, %v83
    %v198 = vsub.f32 %v184, %v196
    %v199 = vsub.f32 %v189, %v197
    %v200 = vmul.f32 %v198, %v198
    %v201 = vmul.f32 %v199, %v199
    %202 = vadd.xlane.f32.xlu0 %v200
    %v203 = vpop.xlane.xlu0 %202
    %204 = vadd.xlane.f32.xlu0 %v201
    %v205 = vpop.xlane.xlu0 %204
    %v206 = vmul.f32 %v203, %v83
    %v207 = vmul.f32 %v205, %v83
    %v208 = vadd.f32 %v206, 1e-05
    %v209 = vadd.f32 %v207, 1e-05
    %v210 = vrsqrt.pop %v208
    %v211 = vrsqrt.pop %v209
    %v212 = vmul.f32 %v16, %v210
    %v213 = vmul.f32 %v17, %v211
    %215 = vset.pattern.permute.xlu0 4
    %216 = vperm.xlu0 %215, %v212
    %v217 = vpop.permute.xlu0 %216
    %220 = vset.pattern.permute.xlu0 4
    %221 = vperm.xlu0 %220, %v213
    %v222 = vpop.permute.xlu0 %221
    %v224 = vmul.f32 %v217, %v198
    %v225 = vmul.f32 %v222, %v199
    %226 = vset.pattern.permute.xlu0 5
    %227 = vperm.xlu0 %226, %v16
    %v228 = vpop.permute.xlu0 %227
    %231 = vset.pattern.permute.xlu0 5
    %232 = vperm.xlu0 %231, %v17
    %v233 = vpop.permute.xlu0 %232
    %v235 = vadd.f32 %v224, %v228
    %v236 = vadd.f32 %v225, %v233
    %v237 = vmax.f32 %v235, 0.0
    %v238 = vmax.f32 %v236, 0.0
    %vm239 = vcmask 130048
    %v241 = vsel %vm239, %v20, 0
    %v244 = vsel %vm239, %v21, 0
    %246 = vmatprep.subr.mxu0 0.0
    %247 = vmatpush1.msra.mxu0 0.0
    %248 = vmatprep.subr.mxu0 0.0
    %249 = vmatpush1.msra.mxu0 0.0
    %250 = vmatprep.subr.mxu0 0.0
    %251 = vmatpush1.msra.mxu0 0.0
    %252 = vmatprep.subr.mxu0 0.0
    %253 = vmatpush1.msra.mxu0 0.0
    %254 = vmatprep.subr.mxu0 0.0
    %255 = vmatpush1.msra.mxu0 0.0
    %256 = vmatprep.subr.mxu0 0.0
    %257 = vmatpush1.msra.mxu0 0.0
    %258 = vmatprep.subr.mxu0 0.0
    %259 = vmatpush1.msra.mxu0 0.0
    %260 = vmatprep.subr.mxu0 0.0
    %261 = vmatpush1.msra.mxu0 0.0
    %262 = vmatprep.subr.mxu0 0.0
    %263 = vmatpush1.msra.mxu0 0.0
    %264 = vmatprep.subr.mxu0 0.0
    %265 = vmatpush1.msra.mxu0 0.0
    %266 = vmatprep.subr.mxu0 0.0
    %267 = vmatpush1.msra.mxu0 0.0
    %268 = vmatprep.subr.mxu0 0.0
    %269 = vmatpush1.msra.mxu0 0.0
    %270 = vmatprep.subr.mxu0 0.0
    %271 = vmatpush1.msra.mxu0 0.0
    %272 = vmatprep.subr.mxu0 0.0
    %273 = vmatpush1.msra.mxu0 0.0
    %274 = vmatprep.subr.mxu0 0.0
    %275 = vmatpush1.msra.mxu0 %v238
    %276 = vmatprep.subr.mxu0 0.0
    %277 = vmatpush1.msra.mxu0 %v237
    %278 = vmatprep.subr.mxu0 0.0
    %279 = vmatpush2.msra.mxu0 0.0
    %280 = vmatprep.subr.mxu0 0.0
    %281 = vmatpush2.msra.mxu0 0.0
    %282 = vmatprep.subr.mxu0 0.0
    %283 = vmatpush2.msra.mxu0 0.0
    %284 = vmatprep.subr.mxu0 0.0
    %285 = vmatpush2.msra.mxu0 0.0
    %286 = vmatprep.subr.mxu0 0.0
    %287 = vmatpush2.msra.mxu0 0.0
    %288 = vmatprep.subr.mxu0 0.0
    %289 = vmatpush2.msra.mxu0 0.0
    %290 = vmatprep.subr.mxu0 0.0
    %291 = vmatpush2.msra.mxu0 0.0
    %292 = vmatprep.subr.mxu0 0.0
    %293 = vmatpush2.msra.mxu0 0.0
    %294 = vmatprep.subr.mxu0 0.0
    %295 = vmatpush2.msra.mxu0 0.0
    %296 = vmatprep.subr.mxu0 0.0
    %297 = vmatpush2.msra.mxu0 0.0
    %298 = vmatprep.subr.mxu0 0.0
    %299 = vmatpush2.msra.mxu0 0.0
    %300 = vmatprep.subr.mxu0 0.0
    %301 = vmatpush2.msra.mxu0 0.0
    %302 = vmatprep.subr.mxu0 0.0
    %303 = vmatpush2.msra.mxu0 0.0
    %304 = vmatprep.subr.mxu0 0.0
    %305 = vmatpush2.msra.mxu0 0.0
    %306 = vmatprep.subr.mxu0 0.0
    %307 = vmatpush2.msra.mxu0 0.0
    %308 = vmatprep.subr.mxu0 0.0
    %309 = vmatpush2.msra.mxu0 0.0
    %310 = vmatprep.mubr.f32.mxu0 0.0
    %311 = vmatmul.mubr.f32.gmra.mxu0 %v241
    %v312 = vpop.f32.mrf.mxu0
    %v313 = vadd.f32 0.0, %v312
    %v314 = vpop.f32.mrf.mxu0
    %315 = vmatprep.mubr.f32.mxu0 0.0
    %316 = vmatmul.mubr.f32.gmra.mxu0 %v244
    %v317 = vpop.f32.mrf.mxu0
    %v318 = vadd.f32 0.0, %v317
    %v319 = vpop.f32.mrf.mxu0
    %320 = vdwg.mxu0
    %321 = vadd.xlane.f32.xlu0 %v313
    %v322 = vpop.xlane.xlu0 %321
    %323 = vadd.xlane.f32.xlu0 %v318
    %v324 = vpop.xlane.xlu0 %323
    %v325 = vmul.f32 %v322, %v83
    %v326 = vmul.f32 %v324, %v83
    %v327 = vsub.f32 %v313, %v325
    %v328 = vsub.f32 %v318, %v326
    %v329 = vmul.f32 %v327, %v327
    %v330 = vmul.f32 %v328, %v328
    %331 = vadd.xlane.f32.xlu0 %v329
    %v332 = vpop.xlane.xlu0 %331
    %333 = vadd.xlane.f32.xlu0 %v330
    %v334 = vpop.xlane.xlu0 %333
    %v335 = vmul.f32 %v332, %v83
    %v336 = vmul.f32 %v334, %v83
    %v337 = vadd.f32 %v335, 1e-05
    %v338 = vadd.f32 %v336, 1e-05
    %v339 = vrsqrt.pop %v337
    %v340 = vrsqrt.pop %v338
    %v341 = vmul.f32 %v16, %v339
    %v342 = vmul.f32 %v17, %v340
    %344 = vset.pattern.permute.xlu0 6
    %345 = vperm.xlu0 %344, %v341
    %v346 = vpop.permute.xlu0 %345
    %349 = vset.pattern.permute.xlu0 6
    %350 = vperm.xlu0 %349, %v342
    %v351 = vpop.permute.xlu0 %350
    %v353 = vmul.f32 %v346, %v327
    %v354 = vmul.f32 %v351, %v328
    %355 = vset.pattern.permute.xlu0 7
    %356 = vperm.xlu0 %355, %v16
    %v357 = vpop.permute.xlu0 %356
    %359 = vset.pattern.permute.xlu0 7
    %360 = vperm.xlu0 %359, %v17
    %v361 = vpop.permute.xlu0 %360
    %v363 = vadd.f32 %v353, %v357
    %v364 = vadd.f32 %v354, %v361
    %v365 = vmax.f32 %v363, 0.0
    %v366 = vmax.f32 %v364, 0.0
    %367 = vset.pattern.permute.xlu0 10
    %368 = vperm.xlu0 %367, %v16
    %v369 = vpop.permute.xlu0 %368
    %371 = vset.pattern.permute.xlu0 10
    %372 = vperm.xlu0 %371, %v17
    %v373 = vpop.permute.xlu0 %372
    %v375 = vmul.f32 %v365, %v369
    %v376 = vmul.f32 %v366, %v373
    %377 = vrot.lane.b32.xlu0 %v365, 4
    %v378 = vpop.permute.xlu0 %377
    %379 = vrot.lane.b32.xlu0 %v366, 4
    %v380 = vpop.permute.xlu0 %379
    %v381 = vsel %vm46, 1, 0
    %vm382 = vcmp.eq.s32.totalorder %v381, 1
    %v383 = vsel %vm382, %v378, 0.0
    %v384 = vsel %vm382, %v380, 0.0
    %385 = vset.pattern.permute.xlu0 8
    %386 = vperm.xlu0 %385, %v16
    %v387 = vpop.permute.xlu0 %386
    %389 = vset.pattern.permute.xlu0 8
    %390 = vperm.xlu0 %389, %v17
    %v391 = vpop.permute.xlu0 %390
    %v393 = vmul.f32 %v383, %v387
    %v394 = vmul.f32 %v384, %v391
    %v395 = vadd.f32 %v375, %v393
    %v396 = vadd.f32 %v376, %v394
    %397 = vrot.lane.b32.xlu0 %v365, 2
    %v398 = vpop.permute.xlu0 %397
    %399 = vrot.lane.b32.xlu0 %v366, 2
    %v400 = vpop.permute.xlu0 %399
    %v401 = vsel %vm62, %v398, 0.0
    %v402 = vsel %vm62, %v400, 0.0
    %403 = vset.pattern.permute.xlu0 9
    %404 = vperm.xlu0 %403, %v16
    %v405 = vpop.permute.xlu0 %404
    %407 = vset.pattern.permute.xlu0 9
    %408 = vperm.xlu0 %407, %v17
    %v409 = vpop.permute.xlu0 %408
    %v411 = vmul.f32 %v401, %v405
    %v412 = vmul.f32 %v402, %v409
    %v413 = vadd.f32 %v395, %v411
    %v414 = vadd.f32 %v396, %v412
    %415 = vadd.xlane.f32.xlu0 %v413
    %v416 = vpop.xlane.xlu0 %415
    %417 = vadd.xlane.f32.xlu0 %v414
    %v418 = vpop.xlane.xlu0 %417
    %v419 = vmul.f32 %v416, %v83
    %v420 = vmul.f32 %v418, %v83
    %v421 = vmul.f32 %v413, %v413
    %v422 = vmul.f32 %v414, %v414
    %423 = vadd.xlane.f32.xlu0 %v421
    %v424 = vpop.xlane.xlu0 %423
    %425 = vadd.xlane.f32.xlu0 %v422
    %v426 = vpop.xlane.xlu0 %425
    %v427 = vmul.f32 %v424, %v83
    %v428 = vmul.f32 %v426, %v83
    %v429 = vmul.f32 %v419, %v419
    %v430 = vmul.f32 %v420, %v420
    %v431 = vsub.f32 %v427, %v429
    %v432 = vsub.f32 %v428, %v430
    %v433 = vmax.f32 %v431, 0.0
    %v434 = vmax.f32 %v432, 0.0
    %v435 = vadd.f32 %v433, 1e-05
    %v436 = vadd.f32 %v434, 1e-05
    %v437 = vrsqrt.pop %v435
    %v438 = vrsqrt.pop %v436
    %v439 = vmul.f32 %v16, %v437
    %v440 = vmul.f32 %v17, %v438
    %442 = vset.pattern.permute.xlu0 11
    %443 = vperm.xlu0 %442, %v439
    %v444 = vpop.permute.xlu0 %443
    %447 = vset.pattern.permute.xlu0 11
    %448 = vperm.xlu0 %447, %v440
    %v449 = vpop.permute.xlu0 %448
    %v451 = vsel %vm50, %v444, 0.0
    %v452 = vsel %vm52, %v449, 0.0
    %v453 = vsel %vm239, %v451, 0.0
    %v454 = vsel %vm239, %v452, 0.0
    %v455 = vadd.f32 %v453, %v454
    %v456 = vrot.slane %v455, 4
    %v457 = vadd.f32 %v455, %v456
    %v458 = vrot.slane %v457, 2
    %v459 = vadd.f32 %v457, %v458
    %v460 = vrot.slane %v459, 1
    %v461 = vadd.f32 %v459, %v460
    %v462 = vmul.f32 %v22, %v461
    %v463 = vmul.f32 %v23, %v461
    %v465 = vsel %vm239, %v462, 0
    %v468 = vsel %vm239, %v463, 0
    %470 = vmatprep.subr.mxu0 0.0
    %471 = vmatpush1.msra.mxu0 0.0
    %472 = vmatprep.subr.mxu0 0.0
    %473 = vmatpush1.msra.mxu0 0.0
    %474 = vmatprep.subr.mxu0 0.0
    %475 = vmatpush1.msra.mxu0 0.0
    %476 = vmatprep.subr.mxu0 0.0
    %477 = vmatpush1.msra.mxu0 0.0
    %478 = vmatprep.subr.mxu0 0.0
    %479 = vmatpush1.msra.mxu0 0.0
    %480 = vmatprep.subr.mxu0 0.0
    %481 = vmatpush1.msra.mxu0 0.0
    %482 = vmatprep.subr.mxu0 0.0
    %483 = vmatpush1.msra.mxu0 0.0
    %484 = vmatprep.subr.mxu0 0.0
    %485 = vmatpush1.msra.mxu0 0.0
    %486 = vmatprep.subr.mxu0 0.0
    %487 = vmatpush1.msra.mxu0 0.0
    %488 = vmatprep.subr.mxu0 0.0
    %489 = vmatpush1.msra.mxu0 0.0
    %490 = vmatprep.subr.mxu0 0.0
    %491 = vmatpush1.msra.mxu0 0.0
    %492 = vmatprep.subr.mxu0 0.0
    %493 = vmatpush1.msra.mxu0 0.0
    %494 = vmatprep.subr.mxu0 0.0
    %495 = vmatpush1.msra.mxu0 0.0
    %496 = vmatprep.subr.mxu0 0.0
    %497 = vmatpush1.msra.mxu0 0.0
    %498 = vmatprep.subr.mxu0 0.0
    %499 = vmatpush1.msra.mxu0 %v414
    %500 = vmatprep.subr.mxu0 0.0
    %501 = vmatpush1.msra.mxu0 %v413
    %502 = vmatprep.subr.mxu0 0.0
    %503 = vmatpush2.msra.mxu0 0.0
    %504 = vmatprep.subr.mxu0 0.0
    %505 = vmatpush2.msra.mxu0 0.0
    %506 = vmatprep.subr.mxu0 0.0
    %507 = vmatpush2.msra.mxu0 0.0
    %508 = vmatprep.subr.mxu0 0.0
    %509 = vmatpush2.msra.mxu0 0.0
    %510 = vmatprep.subr.mxu0 0.0
    %511 = vmatpush2.msra.mxu0 0.0
    %512 = vmatprep.subr.mxu0 0.0
    %513 = vmatpush2.msra.mxu0 0.0
    %514 = vmatprep.subr.mxu0 0.0
    %515 = vmatpush2.msra.mxu0 0.0
    %516 = vmatprep.subr.mxu0 0.0
    %517 = vmatpush2.msra.mxu0 0.0
    %518 = vmatprep.subr.mxu0 0.0
    %519 = vmatpush2.msra.mxu0 0.0
    %520 = vmatprep.subr.mxu0 0.0
    %521 = vmatpush2.msra.mxu0 0.0
    %522 = vmatprep.subr.mxu0 0.0
    %523 = vmatpush2.msra.mxu0 0.0
    %524 = vmatprep.subr.mxu0 0.0
    %525 = vmatpush2.msra.mxu0 0.0
    %526 = vmatprep.subr.mxu0 0.0
    %527 = vmatpush2.msra.mxu0 0.0
    %528 = vmatprep.subr.mxu0 0.0
    %529 = vmatpush2.msra.mxu0 0.0
    %530 = vmatprep.subr.mxu0 0.0
    %531 = vmatpush2.msra.mxu0 0.0
    %532 = vmatprep.subr.mxu0 0.0
    %533 = vmatpush2.msra.mxu0 0.0
    %534 = vmatprep.mubr.f32.mxu0 0.0
    %535 = vmatmul.mubr.f32.gmra.mxu0 %v465
    %v536 = vpop.f32.mrf.mxu0
    %v537 = vadd.f32 0.0, %v536
    %v538 = vpop.f32.mrf.mxu0
    %539 = vmatprep.mubr.f32.mxu0 0.0
    %540 = vmatmul.mubr.f32.gmra.mxu0 %v468
    %v541 = vpop.f32.mrf.mxu0
    %v542 = vadd.f32 0.0, %v541
    %v543 = vpop.f32.mrf.mxu0
    %544 = vdwg.mxu0
    %545 = vadd.xlane.f32.xlu0 %v537
    %v546 = vpop.xlane.xlu0 %545
    %547 = vadd.xlane.f32.xlu0 %v542
    %v548 = vpop.xlane.xlu0 %547
    %v549 = vmul.f32 %v546, %v83
    %v550 = vmul.f32 %v548, %v83
    %v551 = vsub.f32 %v537, %v549
    %v552 = vsub.f32 %v542, %v550
    %v553 = vmul.f32 %v551, %v551
    %v554 = vmul.f32 %v552, %v552
    %555 = vadd.xlane.f32.xlu0 %v553
    %v556 = vpop.xlane.xlu0 %555
    %557 = vadd.xlane.f32.xlu0 %v554
    %v558 = vpop.xlane.xlu0 %557
    %v559 = vmul.f32 %v556, %v83
    %v560 = vmul.f32 %v558, %v83
    %v561 = vadd.f32 %v559, 1e-05
    %v562 = vadd.f32 %v560, 1e-05
    %v563 = vrsqrt.pop %v561
    %v564 = vrsqrt.pop %v562
    %v565 = vmul.f32 %v16, %v563
    %v566 = vmul.f32 %v17, %v564
    %568 = vset.pattern.permute.xlu0 12
    %569 = vperm.xlu0 %568, %v565
    %v570 = vpop.permute.xlu0 %569
    %573 = vset.pattern.permute.xlu0 12
    %574 = vperm.xlu0 %573, %v566
    %v575 = vpop.permute.xlu0 %574
    %v577 = vmul.f32 %v570, %v551
    %v578 = vmul.f32 %v575, %v552
    %579 = vset.pattern.permute.xlu0 13
    %580 = vperm.xlu0 %579, %v16
    %v581 = vpop.permute.xlu0 %580
    %583 = vset.pattern.permute.xlu0 13
    %584 = vperm.xlu0 %583, %v17
    %v585 = vpop.permute.xlu0 %584
    %v587 = vadd.f32 %v577, %v581
    %v588 = vadd.f32 %v578, %v585
    %v589 = vmax.f32 %v587, 0.0
    %v590 = vmax.f32 %v588, 0.0
    %v592 = vsel %vm239, %v24, 0
    %v595 = vsel %vm239, %v25, 0
    %597 = vmatprep.subr.mxu0 0.0
    %598 = vmatpush1.msra.mxu0 0.0
    %599 = vmatprep.subr.mxu0 0.0
    %600 = vmatpush1.msra.mxu0 0.0
    %601 = vmatprep.subr.mxu0 0.0
    %602 = vmatpush1.msra.mxu0 0.0
    %603 = vmatprep.subr.mxu0 0.0
    %604 = vmatpush1.msra.mxu0 0.0
    %605 = vmatprep.subr.mxu0 0.0
    %606 = vmatpush1.msra.mxu0 0.0
    %607 = vmatprep.subr.mxu0 0.0
    %608 = vmatpush1.msra.mxu0 0.0
    %609 = vmatprep.subr.mxu0 0.0
    %610 = vmatpush1.msra.mxu0 0.0
    %611 = vmatprep.subr.mxu0 0.0
    %612 = vmatpush1.msra.mxu0 0.0
    %613 = vmatprep.subr.mxu0 0.0
    %614 = vmatpush1.msra.mxu0 0.0
    %615 = vmatprep.subr.mxu0 0.0
    %616 = vmatpush1.msra.mxu0 0.0
    %617 = vmatprep.subr.mxu0 0.0
    %618 = vmatpush1.msra.mxu0 0.0
    %619 = vmatprep.subr.mxu0 0.0
    %620 = vmatpush1.msra.mxu0 0.0
    %621 = vmatprep.subr.mxu0 0.0
    %622 = vmatpush1.msra.mxu0 0.0
    %623 = vmatprep.subr.mxu0 0.0
    %624 = vmatpush1.msra.mxu0 0.0
    %625 = vmatprep.subr.mxu0 0.0
    %626 = vmatpush1.msra.mxu0 %v590
    %627 = vmatprep.subr.mxu0 0.0
    %628 = vmatpush1.msra.mxu0 %v589
    %629 = vmatprep.subr.mxu0 0.0
    %630 = vmatpush2.msra.mxu0 0.0
    %631 = vmatprep.subr.mxu0 0.0
    %632 = vmatpush2.msra.mxu0 0.0
    %633 = vmatprep.subr.mxu0 0.0
    %634 = vmatpush2.msra.mxu0 0.0
    %635 = vmatprep.subr.mxu0 0.0
    %636 = vmatpush2.msra.mxu0 0.0
    %637 = vmatprep.subr.mxu0 0.0
    %638 = vmatpush2.msra.mxu0 0.0
    %639 = vmatprep.subr.mxu0 0.0
    %640 = vmatpush2.msra.mxu0 0.0
    %641 = vmatprep.subr.mxu0 0.0
    %642 = vmatpush2.msra.mxu0 0.0
    %643 = vmatprep.subr.mxu0 0.0
    %644 = vmatpush2.msra.mxu0 0.0
    %645 = vmatprep.subr.mxu0 0.0
    %646 = vmatpush2.msra.mxu0 0.0
    %647 = vmatprep.subr.mxu0 0.0
    %648 = vmatpush2.msra.mxu0 0.0
    %649 = vmatprep.subr.mxu0 0.0
    %650 = vmatpush2.msra.mxu0 0.0
    %651 = vmatprep.subr.mxu0 0.0
    %652 = vmatpush2.msra.mxu0 0.0
    %653 = vmatprep.subr.mxu0 0.0
    %654 = vmatpush2.msra.mxu0 0.0
    %655 = vmatprep.subr.mxu0 0.0
    %656 = vmatpush2.msra.mxu0 0.0
    %657 = vmatprep.subr.mxu0 0.0
    %658 = vmatpush2.msra.mxu0 0.0
    %659 = vmatprep.subr.mxu0 0.0
    %660 = vmatpush2.msra.mxu0 0.0
    %661 = vmatprep.mubr.f32.mxu0 0.0
    %662 = vmatmul.mubr.f32.gmra.mxu0 %v592
    %v663 = vpop.f32.mrf.mxu0
    %v664 = vadd.f32 0.0, %v663
    %v665 = vpop.f32.mrf.mxu0
    %666 = vmatprep.mubr.f32.mxu0 0.0
    %667 = vmatmul.mubr.f32.gmra.mxu0 %v595
    %v668 = vpop.f32.mrf.mxu0
    %v669 = vadd.f32 0.0, %v668
    %v670 = vpop.f32.mrf.mxu0
    %671 = vdwg.mxu0
    %672 = vadd.xlane.f32.xlu0 %v664
    %v673 = vpop.xlane.xlu0 %672
    %674 = vadd.xlane.f32.xlu0 %v669
    %v675 = vpop.xlane.xlu0 %674
    %v676 = vmul.f32 %v673, %v83
    %v677 = vmul.f32 %v675, %v83
    %v678 = vsub.f32 %v664, %v676
    %v679 = vsub.f32 %v669, %v677
    %v680 = vmul.f32 %v678, %v678
    %v681 = vmul.f32 %v679, %v679
    %682 = vadd.xlane.f32.xlu0 %v680
    %v683 = vpop.xlane.xlu0 %682
    %684 = vadd.xlane.f32.xlu0 %v681
    %v685 = vpop.xlane.xlu0 %684
    %v686 = vmul.f32 %v683, %v83
    %v687 = vmul.f32 %v685, %v83
    %v688 = vadd.f32 %v686, 1e-05
    %v689 = vadd.f32 %v687, 1e-05
    %v690 = vrsqrt.pop %v688
    %v691 = vrsqrt.pop %v689
    %v692 = vmul.f32 %v16, %v690
    %v693 = vmul.f32 %v17, %v691
    %695 = vset.pattern.permute.xlu0 14
    %696 = vperm.xlu0 %695, %v692
    %v697 = vpop.permute.xlu0 %696
    %700 = vset.pattern.permute.xlu0 14
    %701 = vperm.xlu0 %700, %v693
    %v702 = vpop.permute.xlu0 %701
    %v704 = vmul.f32 %v697, %v678
    %v705 = vmul.f32 %v702, %v679
    %706 = vset.pattern.permute.xlu0 15
    %707 = vperm.xlu0 %706, %v16
    %v708 = vpop.permute.xlu0 %707
    %710 = vset.pattern.permute.xlu0 15
    %711 = vperm.xlu0 %710, %v17
    %v712 = vpop.permute.xlu0 %711
    %v714 = vadd.f32 %v704, %v708
    %v715 = vadd.f32 %v705, %v712
    %v716 = vadd.f32 %v714, %v365
    %v717 = vadd.f32 %v715, %v366
    %v718 = vmax.f32 %v716, 0.0
    %v719 = vmax.f32 %v717, 0.0
    %720 = vset.pattern.permute.xlu0 18
    %721 = vperm.xlu0 %720, %v16
    %v722 = vpop.permute.xlu0 %721
    %724 = vset.pattern.permute.xlu0 18
    %725 = vperm.xlu0 %724, %v17
    %v726 = vpop.permute.xlu0 %725
    %v728 = vmul.f32 %v718, %v722
    %v729 = vmul.f32 %v719, %v726
    %730 = vrot.lane.b32.xlu0 %v718, 8
    %v731 = vpop.permute.xlu0 %730
    %732 = vrot.lane.b32.xlu0 %v719, 8
    %v733 = vpop.permute.xlu0 %732
    %v734 = vsel %vm47, 1, 0
    %vm735 = vcmp.eq.s32.totalorder %v734, 1
    %v736 = vsel %vm735, %v731, 0.0
    %v737 = vsel %vm735, %v733, 0.0
    %738 = vset.pattern.permute.xlu0 16
    %739 = vperm.xlu0 %738, %v16
    %v740 = vpop.permute.xlu0 %739
    %742 = vset.pattern.permute.xlu0 16
    %743 = vperm.xlu0 %742, %v17
    %v744 = vpop.permute.xlu0 %743
    %v746 = vmul.f32 %v736, %v740
    %v747 = vmul.f32 %v737, %v744
    %v748 = vadd.f32 %v728, %v746
    %v749 = vadd.f32 %v729, %v747
    %750 = vrot.lane.b32.xlu0 %v718, 4
    %v751 = vpop.permute.xlu0 %750
    %752 = vrot.lane.b32.xlu0 %v719, 4
    %v753 = vpop.permute.xlu0 %752
    %v754 = vsel %vm382, %v751, 0.0
    %v755 = vsel %vm382, %v753, 0.0
    %756 = vset.pattern.permute.xlu0 17
    %757 = vperm.xlu0 %756, %v16
    %v758 = vpop.permute.xlu0 %757
    %760 = vset.pattern.permute.xlu0 17
    %761 = vperm.xlu0 %760, %v17
    %v762 = vpop.permute.xlu0 %761
    %v764 = vmul.f32 %v754, %v758
    %v765 = vmul.f32 %v755, %v762
    %v766 = vadd.f32 %v748, %v764
    %v767 = vadd.f32 %v749, %v765
    %768 = vadd.xlane.f32.xlu0 %v766
    %v769 = vpop.xlane.xlu0 %768
    %770 = vadd.xlane.f32.xlu0 %v767
    %v771 = vpop.xlane.xlu0 %770
    %v772 = vmul.f32 %v769, %v83
    %v773 = vmul.f32 %v771, %v83
    %v774 = vmul.f32 %v766, %v766
    %v775 = vmul.f32 %v767, %v767
    %776 = vadd.xlane.f32.xlu0 %v774
    %v777 = vpop.xlane.xlu0 %776
    %778 = vadd.xlane.f32.xlu0 %v775
    %v779 = vpop.xlane.xlu0 %778
    %v780 = vmul.f32 %v777, %v83
    %v781 = vmul.f32 %v779, %v83
    %v782 = vmul.f32 %v772, %v772
    %v783 = vmul.f32 %v773, %v773
    %v784 = vsub.f32 %v780, %v782
    %v785 = vsub.f32 %v781, %v783
    %v786 = vmax.f32 %v784, 0.0
    %v787 = vmax.f32 %v785, 0.0
    %v788 = vadd.f32 %v786, 1e-05
    %v789 = vadd.f32 %v787, 1e-05
    %v790 = vrsqrt.pop %v788
    %v791 = vrsqrt.pop %v789
    %v792 = vmul.f32 %v16, %v790
    %v793 = vmul.f32 %v17, %v791
    %795 = vset.pattern.permute.xlu0 19
    %796 = vperm.xlu0 %795, %v792
    %v797 = vpop.permute.xlu0 %796
    %800 = vset.pattern.permute.xlu0 19
    %801 = vperm.xlu0 %800, %v793
    %v802 = vpop.permute.xlu0 %801
    %v804 = vsel %vm50, %v797, 0.0
    %v805 = vsel %vm52, %v802, 0.0
    %v806 = vsel %vm239, %v804, 0.0
    %v807 = vsel %vm239, %v805, 0.0
    %v808 = vadd.f32 %v806, %v807
    %v809 = vrot.slane %v808, 4
    %v810 = vadd.f32 %v808, %v809
    %v811 = vrot.slane %v810, 2
    %v812 = vadd.f32 %v810, %v811
    %v813 = vrot.slane %v812, 1
    %v814 = vadd.f32 %v812, %v813
    %v815 = vmul.f32 %v26, %v814
    %v816 = vmul.f32 %v27, %v814
    %v818 = vsel %vm239, %v815, 0
    %v821 = vsel %vm239, %v816, 0
    %823 = vmatprep.subr.mxu0 0.0
    %824 = vmatpush1.msra.mxu0 0.0
    %825 = vmatprep.subr.mxu0 0.0
    %826 = vmatpush1.msra.mxu0 0.0
    %827 = vmatprep.subr.mxu0 0.0
    %828 = vmatpush1.msra.mxu0 0.0
    %829 = vmatprep.subr.mxu0 0.0
    %830 = vmatpush1.msra.mxu0 0.0
    %831 = vmatprep.subr.mxu0 0.0
    %832 = vmatpush1.msra.mxu0 0.0
    %833 = vmatprep.subr.mxu0 0.0
    %834 = vmatpush1.msra.mxu0 0.0
    %835 = vmatprep.subr.mxu0 0.0
    %836 = vmatpush1.msra.mxu0 0.0
    %837 = vmatprep.subr.mxu0 0.0
    %838 = vmatpush1.msra.mxu0 0.0
    %839 = vmatprep.subr.mxu0 0.0
    %840 = vmatpush1.msra.mxu0 0.0
    %841 = vmatprep.subr.mxu0 0.0
    %842 = vmatpush1.msra.mxu0 0.0
    %843 = vmatprep.subr.mxu0 0.0
    %844 = vmatpush1.msra.mxu0 0.0
    %845 = vmatprep.subr.mxu0 0.0
    %846 = vmatpush1.msra.mxu0 0.0
    %847 = vmatprep.subr.mxu0 0.0
    %848 = vmatpush1.msra.mxu0 0.0
    %849 = vmatprep.subr.mxu0 0.0
    %850 = vmatpush1.msra.mxu0 0.0
    %851 = vmatprep.subr.mxu0 0.0
    %852 = vmatpush1.msra.mxu0 %v767
    %853 = vmatprep.subr.mxu0 0.0
    %854 = vmatpush1.msra.mxu0 %v766
    %855 = vmatprep.subr.mxu0 0.0
    %856 = vmatpush2.msra.mxu0 0.0
    %857 = vmatprep.subr.mxu0 0.0
    %858 = vmatpush2.msra.mxu0 0.0
    %859 = vmatprep.subr.mxu0 0.0
    %860 = vmatpush2.msra.mxu0 0.0
    %861 = vmatprep.subr.mxu0 0.0
    %862 = vmatpush2.msra.mxu0 0.0
    %863 = vmatprep.subr.mxu0 0.0
    %864 = vmatpush2.msra.mxu0 0.0
    %865 = vmatprep.subr.mxu0 0.0
    %866 = vmatpush2.msra.mxu0 0.0
    %867 = vmatprep.subr.mxu0 0.0
    %868 = vmatpush2.msra.mxu0 0.0
    %869 = vmatprep.subr.mxu0 0.0
    %870 = vmatpush2.msra.mxu0 0.0
    %871 = vmatprep.subr.mxu0 0.0
    %872 = vmatpush2.msra.mxu0 0.0
    %873 = vmatprep.subr.mxu0 0.0
    %874 = vmatpush2.msra.mxu0 0.0
    %875 = vmatprep.subr.mxu0 0.0
    %876 = vmatpush2.msra.mxu0 0.0
    %877 = vmatprep.subr.mxu0 0.0
    %878 = vmatpush2.msra.mxu0 0.0
    %879 = vmatprep.subr.mxu0 0.0
    %880 = vmatpush2.msra.mxu0 0.0
    %881 = vmatprep.subr.mxu0 0.0
    %882 = vmatpush2.msra.mxu0 0.0
    %883 = vmatprep.subr.mxu0 0.0
    %884 = vmatpush2.msra.mxu0 0.0
    %885 = vmatprep.subr.mxu0 0.0
    %886 = vmatpush2.msra.mxu0 0.0
    %887 = vmatprep.mubr.f32.mxu0 0.0
    %888 = vmatmul.mubr.f32.gmra.mxu0 %v818
    %v889 = vpop.f32.mrf.mxu0
    %v890 = vadd.f32 0.0, %v889
    %v891 = vpop.f32.mrf.mxu0
    %892 = vmatprep.mubr.f32.mxu0 0.0
    %893 = vmatmul.mubr.f32.gmra.mxu0 %v821
    %v894 = vpop.f32.mrf.mxu0
    %v895 = vadd.f32 0.0, %v894
    %v896 = vpop.f32.mrf.mxu0
    %897 = vdwg.mxu0
    %898 = vadd.xlane.f32.xlu0 %v890
    %v899 = vpop.xlane.xlu0 %898
    %900 = vadd.xlane.f32.xlu0 %v895
    %v901 = vpop.xlane.xlu0 %900
    %v902 = vmul.f32 %v899, %v83
    %v903 = vmul.f32 %v901, %v83
    %v904 = vsub.f32 %v890, %v902
    %v905 = vsub.f32 %v895, %v903
    %v906 = vmul.f32 %v904, %v904
    %v907 = vmul.f32 %v905, %v905
    %908 = vadd.xlane.f32.xlu0 %v906
    %v909 = vpop.xlane.xlu0 %908
    %910 = vadd.xlane.f32.xlu0 %v907
    %v911 = vpop.xlane.xlu0 %910
    %v912 = vmul.f32 %v909, %v83
    %v913 = vmul.f32 %v911, %v83
    %v914 = vadd.f32 %v912, 1e-05
    %v915 = vadd.f32 %v913, 1e-05
    %v916 = vrsqrt.pop %v914
    %v917 = vrsqrt.pop %v915
    %v918 = vmul.f32 %v16, %v916
    %v919 = vmul.f32 %v17, %v917
    %921 = vset.pattern.permute.xlu0 20
    %922 = vperm.xlu0 %921, %v918
    %v923 = vpop.permute.xlu0 %922
    %926 = vset.pattern.permute.xlu0 20
    %927 = vperm.xlu0 %926, %v919
    %v928 = vpop.permute.xlu0 %927
    %v930 = vmul.f32 %v923, %v904
    %v931 = vmul.f32 %v928, %v905
    %932 = vset.pattern.permute.xlu0 21
    %933 = vperm.xlu0 %932, %v16
    %v934 = vpop.permute.xlu0 %933
    %936 = vset.pattern.permute.xlu0 21
    %937 = vperm.xlu0 %936, %v17
    %v938 = vpop.permute.xlu0 %937
    %v940 = vadd.f32 %v930, %v934
    %v941 = vadd.f32 %v931, %v938
    %v942 = vmax.f32 %v940, 0.0
    %v943 = vmax.f32 %v941, 0.0
    %v945 = vsel %vm239, %v28, 0
    %v948 = vsel %vm239, %v29, 0
    %950 = vmatprep.subr.mxu0 0.0
    %951 = vmatpush1.msra.mxu0 0.0
    %952 = vmatprep.subr.mxu0 0.0
    %953 = vmatpush1.msra.mxu0 0.0
    %954 = vmatprep.subr.mxu0 0.0
    %955 = vmatpush1.msra.mxu0 0.0
    %956 = vmatprep.subr.mxu0 0.0
    %957 = vmatpush1.msra.mxu0 0.0
    %958 = vmatprep.subr.mxu0 0.0
    %959 = vmatpush1.msra.mxu0 0.0
    %960 = vmatprep.subr.mxu0 0.0
    %961 = vmatpush1.msra.mxu0 0.0
    %962 = vmatprep.subr.mxu0 0.0
    %963 = vmatpush1.msra.mxu0 0.0
    %964 = vmatprep.subr.mxu0 0.0
    %965 = vmatpush1.msra.mxu0 0.0
    %966 = vmatprep.subr.mxu0 0.0
    %967 = vmatpush1.msra.mxu0 0.0
    %968 = vmatprep.subr.mxu0 0.0
    %969 = vmatpush1.msra.mxu0 0.0
    %970 = vmatprep.subr.mxu0 0.0
    %971 = vmatpush1.msra.mxu0 0.0
    %972 = vmatprep.subr.mxu0 0.0
    %973 = vmatpush1.msra.mxu0 0.0
    %974 = vmatprep.subr.mxu0 0.0
    %975 = vmatpush1.msra.mxu0 0.0
    %976 = vmatprep.subr.mxu0 0.0
    %977 = vmatpush1.msra.mxu0 0.0
    %978 = vmatprep.subr.mxu0 0.0
    %979 = vmatpush1.msra.mxu0 %v943
    %980 = vmatprep.subr.mxu0 0.0
    %981 = vmatpush1.msra.mxu0 %v942
    %982 = vmatprep.subr.mxu0 0.0
    %983 = vmatpush2.msra.mxu0 0.0
    %984 = vmatprep.subr.mxu0 0.0
    %985 = vmatpush2.msra.mxu0 0.0
    %986 = vmatprep.subr.mxu0 0.0
    %987 = vmatpush2.msra.mxu0 0.0
    %988 = vmatprep.subr.mxu0 0.0
    %989 = vmatpush2.msra.mxu0 0.0
    %990 = vmatprep.subr.mxu0 0.0
    %991 = vmatpush2.msra.mxu0 0.0
    %992 = vmatprep.subr.mxu0 0.0
    %993 = vmatpush2.msra.mxu0 0.0
    %994 = vmatprep.subr.mxu0 0.0
    %995 = vmatpush2.msra.mxu0 0.0
    %996 = vmatprep.subr.mxu0 0.0
    %997 = vmatpush2.msra.mxu0 0.0
    %998 = vmatprep.subr.mxu0 0.0
    %999 = vmatpush2.msra.mxu0 0.0
    %1000 = vmatprep.subr.mxu0 0.0
    %1001 = vmatpush2.msra.mxu0 0.0
    %1002 = vmatprep.subr.mxu0 0.0
    %1003 = vmatpush2.msra.mxu0 0.0
    %1004 = vmatprep.subr.mxu0 0.0
    %1005 = vmatpush2.msra.mxu0 0.0
    %1006 = vmatprep.subr.mxu0 0.0
    %1007 = vmatpush2.msra.mxu0 0.0
    %1008 = vmatprep.subr.mxu0 0.0
    %1009 = vmatpush2.msra.mxu0 0.0
    %1010 = vmatprep.subr.mxu0 0.0
    %1011 = vmatpush2.msra.mxu0 0.0
    %1012 = vmatprep.subr.mxu0 0.0
    %1013 = vmatpush2.msra.mxu0 0.0
    %1014 = vmatprep.mubr.f32.mxu0 0.0
    %1015 = vmatmul.mubr.f32.gmra.mxu0 %v945
    %v1016 = vpop.f32.mrf.mxu0
    %v1017 = vadd.f32 0.0, %v1016
    %v1018 = vpop.f32.mrf.mxu0
    %1019 = vmatprep.mubr.f32.mxu0 0.0
    %1020 = vmatmul.mubr.f32.gmra.mxu0 %v948
    %v1021 = vpop.f32.mrf.mxu0
    %v1022 = vadd.f32 0.0, %v1021
    %v1023 = vpop.f32.mrf.mxu0
    %1024 = vdwg.mxu0
    %1025 = vadd.xlane.f32.xlu0 %v1017
    %v1026 = vpop.xlane.xlu0 %1025
    %1027 = vadd.xlane.f32.xlu0 %v1022
    %v1028 = vpop.xlane.xlu0 %1027
    %v1029 = vmul.f32 %v1026, %v83
    %v1030 = vmul.f32 %v1028, %v83
    %v1031 = vsub.f32 %v1017, %v1029
    %v1032 = vsub.f32 %v1022, %v1030
    %v1033 = vmul.f32 %v1031, %v1031
    %v1034 = vmul.f32 %v1032, %v1032
    %1035 = vadd.xlane.f32.xlu0 %v1033
    %v1036 = vpop.xlane.xlu0 %1035
    %1037 = vadd.xlane.f32.xlu0 %v1034
    %v1038 = vpop.xlane.xlu0 %1037
    %v1039 = vmul.f32 %v1036, %v83
    %v1040 = vmul.f32 %v1038, %v83
    %v1041 = vadd.f32 %v1039, 1e-05
    %v1042 = vadd.f32 %v1040, 1e-05
    %v1043 = vrsqrt.pop %v1041
    %v1044 = vrsqrt.pop %v1042
    %v1045 = vmul.f32 %v16, %v1043
    %v1046 = vmul.f32 %v17, %v1044
    %1048 = vset.pattern.permute.xlu0 22
    %1049 = vperm.xlu0 %1048, %v1045
    %v1050 = vpop.permute.xlu0 %1049
    %1053 = vset.pattern.permute.xlu0 22
    %1054 = vperm.xlu0 %1053, %v1046
    %v1055 = vpop.permute.xlu0 %1054
    %v1057 = vmul.f32 %v1050, %v1031
    %v1058 = vmul.f32 %v1055, %v1032
    %1059 = vset.pattern.permute.xlu0 23
    %1060 = vperm.xlu0 %1059, %v16
    %v1061 = vpop.permute.xlu0 %1060
    %1063 = vset.pattern.permute.xlu0 23
    %1064 = vperm.xlu0 %1063, %v17
    %v1065 = vpop.permute.xlu0 %1064
    %v1067 = vadd.f32 %v1057, %v1061
    %v1068 = vadd.f32 %v1058, %v1065
    %v1069 = vadd.f32 %v1067, %v718
    %v1070 = vadd.f32 %v1068, %v719
    %v1071 = vmax.f32 %v1069, 0.0
    %v1072 = vmax.f32 %v1070, 0.0
    %1073 = vst [vmem:[#allocation2] sm:$0xff] %v1071
    %1074 = vst [vmem:[#allocation2 + $0x8] sm:$0xff] %v1072
    // Predicated region
    $region14: #{tpu_custom_call.1} parent=1 // pred_check
      _
    $region15: #{tpu_custom_call.1} parent=1 // pred_check_branch
      %1076 = sbr.rel (0) target = $region17
    $region16: #{tpu_custom_call.1} parent=1 // pred_region
      %s1078 = ssub.s32 256, 256
      %1079 = vsyncadd [#allocation3], %s1078
      %s1080 = sshll.u32 [#allocation2], 4
      %s1081 = int_to_ptr.vmem [resolvable:$true] %s1080
      %1086 = dma.vmem_to_hbm [thread:$0]  %s1081, 256, %s3, [#allocation3], 128, 128, 8
    $region17: #{tpu_custom_call.1} parent=1 // pred_fallthru
      _
    // Predicated region
    $region18: #{tpu_custom_call.1} parent=1 // pred_check
      _
    $region19: #{tpu_custom_call.1} parent=1 // pred_check_branch
      %1088 = sbr.rel (0) target = $region21
    $region20: #{tpu_custom_call.1} parent=1 // pred_region
      %1089 = dma.done [#allocation3], 256
    $region21: #{tpu_custom_call.1} parent=1 // pred_fallthru
      _
    %1090 = vsyncpa [#allocation3], 1

</llo_original>
